<compile_context>
chip_gen: v7x
topology: tpu7x:2x2x1
jax: 0.10.0
libtpu: 0.0.40
codegen_flags: <defaults>
</compile_context>

<pallas_src>
import jax
import jax.numpy as jnp
from jax.experimental import pallas as pl
from jax.experimental.pallas import tpu as pltpu


def _softmaxchain_kernel(q_ref, k_ref, v_ref, mask_ref, o_ref,
                         m_ref, l_ref, acc_ref):
    # Block shapes for the current (batch, head-group, q-tile, kv-tile) point:
    #   q_ref:    (1, HB, TQ, D)
    #   k_ref:    (1, HB, D,  TKV)
    #   v_ref:    (1, HB, TKV, D)
    #   mask_ref: (1, 1,  1,  TKV)
    #   o_ref:    (1, HB, TQ, D)
    #   m_ref/l_ref: (HB, TQ, 1) f32    acc_ref: (HB, TQ, D) f32
    hb = q_ref.shape[1]
    kvi = pl.program_id(3)
    n_kv = pl.num_programs(3)

    @pl.when(kvi == 0)
    def _init():
        m_ref[...] = jnp.full(m_ref.shape, -1e30, dtype=m_ref.dtype)
        l_ref[...] = jnp.zeros_like(l_ref)
        acc_ref[...] = jnp.zeros_like(acc_ref)

    mask = mask_ref[0, 0]  # (1, TKV); broadcasts over query rows in the add.

    for h in range(hb):  # static unroll over packed heads -> cross-head ILP
        # Fold the 1/8 scale into q (power-of-two scale -> bit exact).
        qh = q_ref[0, h] * 0.125                       # (TQ, D)
        kh = k_ref[0, h]                               # (D,  TKV)
        vh = v_ref[0, h]                               # (TKV, D)

        # attention_scores = q @ k / 8 + mask
        s = jnp.dot(qh, kh, preferred_element_type=jnp.float32) + mask  # (TQ,TKV)

        # Online (flash) softmax update.
        m_prev = m_ref[h]                                           # (TQ, 1)
        m_new = jnp.maximum(m_prev, jnp.max(s, axis=-1, keepdims=True))
        alpha = jnp.exp(m_prev - m_new)                             # (TQ, 1)
        p = jnp.exp(s - m_new)                                      # (TQ, TKV)

        l_ref[h] = alpha * l_ref[h] + jnp.sum(p, axis=-1, keepdims=True)

        # Feed the MXU in the input dtype (bf16 -> full-rate on v6e/v7x, halves
        # the (TQ,TKV) operand footprint); keep f32 so the 1e-5 test tolerance
        # path stays exact for f32 inputs.  Accumulation is f32 either way.
        p_mm = p if v_ref.dtype == jnp.float32 else p.astype(v_ref.dtype)
        acc_ref[h] = alpha * acc_ref[h] + jnp.dot(
            p_mm, vh, preferred_element_type=jnp.float32)
        m_ref[h] = m_new

    @pl.when(kvi == n_kv - 1)
    def _finalize():
        for h in range(hb):
            l_h = l_ref[h]
            if o_ref.dtype == jnp.float32:
                inv = 1.0 / l_h                       # exact for the f32 path
            else:
                inv = pl.reciprocal(l_h, approx=True)  # EUP slot, co-issues
            o_ref[0, h] = (acc_ref[h] * inv).astype(o_ref.dtype)


def _vmem_limit_bytes():
    """~75% of physical VMEM: ~96 MiB on v5e/v6e (128 MiB), ~48 MiB on v7x (64 MiB)."""
    phys = 128 * 1024 * 1024
    try:
        info = pltpu.get_tpu_info()
        phys = int(getattr(info, "vmem_capacity_bytes", phys))
    except Exception:
        pass
    return min(int(phys * 3 // 4), 100 * 1024 * 1024)


def _select_tiles(H, S, D, itemsize, budget_bytes,
                  q_block=None, kv_block=None, heads_per_block=None):
    """Pick (tq, tkv, hb) so the per-step VMEM footprint fits the budget."""
    # KV tile is the lane dim of the k block: multiple of 128, or the full S.
    tkv_cands = [c for c in (512, 256, 128) if S % c == 0] or [S]
    # Q tile: multiple of 8 (sublane), prefer 256 to fill the 2x256 MXU on
    # v6e/v7x; fall back to the full S for odd small sequence lengths.
    tq_cands = [c for c in (256, 512, 128, 64, 32, 16, 8) if S % c == 0] or [S]
    # Heads per grid step: >= 2 for cross-head ILP and enough to cover 128 lanes.
    want_hb = min(H, max(2, -(-128 // D)))
    hb_cands = [c for c in range(want_hb, 0, -1) if H % c == 0] or [1]

    if q_block is not None:
        tq_cands = [q_block]
    if kv_block is not None:
        tkv_cands = [kv_block]
    if heads_per_block is not None:
        hb_cands = [heads_per_block]

    def est(tq, tkv, hb):
        dbl = 2  # double-buffered pipeline blocks
        blocks = dbl * itemsize * (hb * tq * D        # q
                                   + hb * D * tkv     # k
                                   + hb * tkv * D     # v
                                   + hb * tq * D)     # out
        blocks += dbl * 4 * 8 * tkv                   # mask (sublane-padded f32)
        scratch = 4 * (2 * hb * tq * 128              # m, l (lane-padded)
                       + hb * tq * D)                 # acc
        working = 4 * 3 * tq * tkv                    # s/p live values + spill
        return blocks + scratch + working

    for hb in hb_cands:
        for tq in tq_cands:
            for tkv in tkv_cands:
                if est(tq, tkv, hb) <= budget_bytes:
                    return tq, tkv, hb
    # Nothing fits the soft budget: take the smallest combination (still correct;
    # the compiler vmem limit is the hard bound).
    return min(tq_cands), min(tkv_cands), min(hb_cands)


def softmaxchain(q, k, v, attention_mask, *,
                 q_block=None, kv_block=None, heads_per_block=None):
    """q: [B,H,S,D], k: [B,H,D,S], v: [B,H,S,D], mask broadcastable to [B,1,1,S]."""
    B, H, S, D = q.shape
    assert k.shape == (B, H, D, S)
    assert v.shape == (B, H, S, D)

    # Compact additive mask; the broadcast happens inside the kernel, not in HBM.
    # TODO(synk): masks with a per-query / per-head dimension (e.g. [B,1,S,S])
    # would need a (1, 1, TQ, TKV) mask BlockSpec instead of this compact path.
    mask = jnp.broadcast_to(attention_mask, (B, 1, 1, S)).astype(jnp.float32)

    itemsize = q.dtype.itemsize
    vmem_limit = _vmem_limit_bytes()
    # Leave headroom below the scoped limit for compiler-internal scratch.
    tq, tkv, hb = _select_tiles(H, S, D, itemsize, int(vmem_limit * 0.6),
                                q_block, kv_block, heads_per_block)
    assert S % tq == 0 and S % tkv == 0 and H % hb == 0
    g = H // hb

    grid = (B, g, S // tq, S // tkv)

    flops = 4 * B * H * S * S * D                       # two S x S x D matmuls
    transcendentals = B * H * S * S                     # exp
    bytes_accessed = (2 * q.size + k.size + v.size) * itemsize + mask.size * 4
    cost = pl.CostEstimate(flops=flops, transcendentals=transcendentals,
                           bytes_accessed=bytes_accessed)

    # NOTE: for D < 128 the (1, hb, tq, D) output block uses lane-masked stores,
    # but it avoids the wrapper un-pack transpose (a full extra HBM pass).
    out = pl.pallas_call(
        _softmaxchain_kernel,
        out_shape=jax.ShapeDtypeStruct((B, H, S, D), q.dtype),
        grid_spec=pltpu.PrefetchScalarGridSpec(
            num_scalar_prefetch=0,
            grid=grid,
            in_specs=[
                pl.BlockSpec((1, hb, tq, D), lambda b, gi, qi, ki: (b, gi, qi, 0)),   # q
                pl.BlockSpec((1, hb, D, tkv), lambda b, gi, qi, ki: (b, gi, 0, ki)),  # k
                pl.BlockSpec((1, hb, tkv, D), lambda b, gi, qi, ki: (b, gi, ki, 0)),  # v
                pl.BlockSpec((1, 1, 1, tkv), lambda b, gi, qi, ki: (b, 0, 0, ki)),    # mask
            ],
            out_specs=pl.BlockSpec((1, hb, tq, D),
                                   lambda b, gi, qi, ki: (b, gi, qi, 0)),
            scratch_shapes=[
                pltpu.VMEM((hb, tq, 1), jnp.float32),   # running max m
                pltpu.VMEM((hb, tq, 1), jnp.float32),   # running sum l
                pltpu.VMEM((hb, tq, D), jnp.float32),   # running context acc
            ],
        ),
        compiler_params=pltpu.CompilerParams(
            dimension_semantics=("parallel", "parallel", "parallel", "arbitrary"),
            vmem_limit_bytes=vmem_limit,
        ),
        cost_estimate=cost,
    )(q, k, v, mask)
    return out


def _reference(q, k, v, attention_mask):
    scores = jnp.matmul(q, k) / 8.0 + attention_mask
    probs = jax.nn.softmax(scores, axis=-1)
    return jnp.matmul(probs, v)


if __name__ == "__main__":
    B, H, S, D = 2, 4, 8, 32
    key = jax.random.PRNGKey(0)
    kq, kk, kv, km = jax.random.split(key, 4)

    q = jax.random.normal(kq, (B, H, S, D), dtype=jnp.float32)
    k = jax.random.normal(kk, (B, H, D, S), dtype=jnp.float32)
    v = jax.random.normal(kv, (B, H, S, D), dtype=jnp.float32)
    # Typical additive attention mask, broadcast shape [B, 1, 1, S].
    attention_mask = jnp.where(
        jax.random.uniform(km, (B, 1, 1, S)) > 0.2, 0.0, -10000.0
    ).astype(jnp.float32)

    out = softmaxchain(q, k, v, attention_mask)
    out = jax.block_until_ready(out)

    ref = _reference(q, k, v, attention_mask)
    assert out.shape == (B, H, S, D)
    assert jnp.allclose(out, ref, atol=1e-5, rtol=1e-5)
    print("KERNEL_OK")
</pallas_src>

<mosaic_0001>
module attributes {stable_mosaic.version = 11 : i64} {
  func.func @_softmaxchain_kernel(%arg0: i32, %arg1: i32, %arg2: i32, %arg3: i32, %arg4: memref<1x4x8x32xf32, #tpu.memory_space<vmem>>, %arg5: memref<1x4x32x8xf32, #tpu.memory_space<vmem>>, %arg6: memref<1x4x8x32xf32, #tpu.memory_space<vmem>>, %arg7: memref<1x1x1x8xf32, #tpu.memory_space<vmem>>, %arg8: memref<1x4x8x32xf32, #tpu.memory_space<vmem>>, %arg9: memref<4x8x1xf32, #tpu.memory_space<vmem>>, %arg10: memref<4x8x1xf32, #tpu.memory_space<vmem>>, %arg11: memref<4x8x32xf32, #tpu.memory_space<vmem>>) attributes {dimension_semantics = [#tpu.dimension_semantics<parallel>, #tpu.dimension_semantics<parallel>, #tpu.dimension_semantics<parallel>, #tpu.dimension_semantics<arbitrary>], iteration_bounds = array<i64: 2, 1, 1, 1>, scalar_prefetch = 0 : i64, scratch_operands = 3 : i64, tpu.core_type = #tpu.core_type<tc>, window_params = [{transform_indices = @transform_0, window_bounds = array<i64: 1, 4, 8, 32>}, {transform_indices = @transform_1, window_bounds = array<i64: 1, 4, 32, 8>}, {transform_indices = @transform_2, window_bounds = array<i64: 1, 4, 8, 32>}, {transform_indices = @transform_3, window_bounds = array<i64: 1, 1, 1, 8>}, {transform_indices = @transform_4, window_bounds = array<i64: 1, 4, 8, 32>}]} {
    %c0_i32 = arith.constant 0 : i32
    %0 = arith.cmpi eq, %arg3, %c0_i32 : i32
    %1 = arith.extui %0 : i1 to i32
    %c0_i32_0 = arith.constant 0 : i32
    %2 = arith.cmpi ne, %1, %c0_i32_0 : i32
    scf.if %2 {
      %cst_142 = arith.constant -1.000000e+30 : f32
      %176 = vector.broadcast %cst_142 : f32 to vector<4x8x1xf32>
      %c0_143 = arith.constant 0 : index
      %c0_144 = arith.constant 0 : index
      %c0_145 = arith.constant 0 : index
      %177 = vector.load %arg9[%c0_143, %c0_144, %c0_145] : memref<4x8x1xf32, #tpu.memory_space<vmem>>, vector<4x8x1xf32>
      tpu.vector_store %arg9[%c0_143, %c0_144, %c0_145], %176 {strides = array<i32>} : memref<4x8x1xf32, #tpu.memory_space<vmem>>, vector<4x8x1xf32>,
      %cst_146 = arith.constant 0.000000e+00 : f32
      %178 = vector.broadcast %cst_146 : f32 to vector<4x8x1xf32>
      %c0_147 = arith.constant 0 : index
      %c0_148 = arith.constant 0 : index
      %c0_149 = arith.constant 0 : index
      %179 = vector.load %arg10[%c0_147, %c0_148, %c0_149] : memref<4x8x1xf32, #tpu.memory_space<vmem>>, vector<4x8x1xf32>
      tpu.vector_store %arg10[%c0_147, %c0_148, %c0_149], %178 {strides = array<i32>} : memref<4x8x1xf32, #tpu.memory_space<vmem>>, vector<4x8x1xf32>,
      %cst_150 = arith.constant 0.000000e+00 : f32
      %180 = vector.broadcast %cst_150 : f32 to vector<4x8x32xf32>
      %c0_151 = arith.constant 0 : index
      %c0_152 = arith.constant 0 : index
      %c0_153 = arith.constant 0 : index
      %181 = vector.load %arg11[%c0_151, %c0_152, %c0_153] : memref<4x8x32xf32, #tpu.memory_space<vmem>>, vector<4x8x32xf32>
      tpu.vector_store %arg11[%c0_151, %c0_152, %c0_153], %180 {strides = array<i32>} : memref<4x8x32xf32, #tpu.memory_space<vmem>>, vector<4x8x32xf32>,
    } else {
    }
    %c0 = arith.constant 0 : index
    %c0_1 = arith.constant 0 : index
    %c0_2 = arith.constant 0 : index
    %c0_3 = arith.constant 0 : index
    %3 = vector.load %arg7[%c0, %c0_1, %c0_2, %c0_3] : memref<1x1x1x8xf32, #tpu.memory_space<vmem>>, vector<1x1x1x8xf32>
    %4 = vector.shape_cast %3 : vector<1x1x1x8xf32> to vector<1x8xf32>
    %c0_4 = arith.constant 0 : index
    %c0_5 = arith.constant 0 : index
    %c0_6 = arith.constant 0 : index
    %c0_7 = arith.constant 0 : index
    %5 = vector.load %arg4[%c0_4, %c0_5, %c0_6, %c0_7] : memref<1x4x8x32xf32, #tpu.memory_space<vmem>>, vector<1x1x8x32xf32>
    %6 = vector.shape_cast %5 : vector<1x1x8x32xf32> to vector<8x32xf32>
    %cst = arith.constant 1.250000e-01 : f32
    %7 = vector.broadcast %cst : f32 to vector<8x32xf32>
    %8 = arith.mulf %6, %7 : vector<8x32xf32>
    %c0_8 = arith.constant 0 : index
    %c0_9 = arith.constant 0 : index
    %c0_10 = arith.constant 0 : index
    %c0_11 = arith.constant 0 : index
    %9 = vector.load %arg5[%c0_8, %c0_9, %c0_10, %c0_11] : memref<1x4x32x8xf32, #tpu.memory_space<vmem>>, vector<1x1x32x8xf32>
    %10 = vector.shape_cast %9 : vector<1x1x32x8xf32> to vector<32x8xf32>
    %c0_12 = arith.constant 0 : index
    %c0_13 = arith.constant 0 : index
    %c0_14 = arith.constant 0 : index
    %c0_15 = arith.constant 0 : index
    %11 = vector.load %arg6[%c0_12, %c0_13, %c0_14, %c0_15] : memref<1x4x8x32xf32, #tpu.memory_space<vmem>>, vector<1x1x8x32xf32>
    %12 = vector.shape_cast %11 : vector<1x1x8x32xf32> to vector<8x32xf32>
    %cst_16 = arith.constant dense<0.000000e+00> : vector<8x8xf32>
    %13 = tpu.matmul %8, %10, %cst_16 {dimension_numbers = #tpu.dot_dimension_numbers<[1], [0], [0], [1], [0, 0, 1, 1], [], []>} : vector<8x32xf32>, vector<32x8xf32>, vector<8x8xf32> -> vector<8x8xf32>
    %14 = vector.broadcast %4 : vector<1x8xf32> to vector<8x8xf32>
    %15 = arith.addf %13, %14 : vector<8x8xf32>
    %c0_17 = arith.constant 0 : index
    %c0_18 = arith.constant 0 : index
    %c0_19 = arith.constant 0 : index
    %16 = vector.load %arg9[%c0_17, %c0_18, %c0_19] : memref<4x8x1xf32, #tpu.memory_space<vmem>>, vector<1x8x1xf32>
    %17 = vector.shape_cast %16 : vector<1x8x1xf32> to vector<8x1xf32>
    %cst_20 = arith.constant dense<0xFF800000> : vector<8xf32>
    %18 = vector.multi_reduction <maximumf>, %15, %cst_20 [1] : vector<8x8xf32> to vector<8xf32>
    %19 = vector.shape_cast %18 : vector<8xf32> to vector<8x1xf32>
    %20 = arith.maximumf %17, %19 : vector<8x1xf32>
    %21 = arith.subf %17, %20 : vector<8x1xf32>
    %22 = math.exp %21 : vector<8x1xf32>
    %23 = vector.broadcast %20 : vector<8x1xf32> to vector<8x8xf32>
    %24 = arith.subf %15, %23 : vector<8x8xf32>
    %25 = math.exp %24 : vector<8x8xf32>
    %c0_21 = arith.constant 0 : index
    %c0_22 = arith.constant 0 : index
    %c0_23 = arith.constant 0 : index
    %26 = vector.load %arg10[%c0_21, %c0_22, %c0_23] : memref<4x8x1xf32, #tpu.memory_space<vmem>>, vector<1x8x1xf32>
    %27 = vector.shape_cast %26 : vector<1x8x1xf32> to vector<8x1xf32>
    %28 = arith.mulf %22, %27 : vector<8x1xf32>
    %cst_24 = arith.constant dense<0.000000e+00> : vector<8xf32>
    %29 = vector.multi_reduction <add>, %25, %cst_24 [1] : vector<8x8xf32> to vector<8xf32>
    %30 = vector.shape_cast %29 : vector<8xf32> to vector<8x1xf32>
    %31 = arith.addf %28, %30 : vector<8x1xf32>
    %c0_25 = arith.constant 0 : index
    %c0_26 = arith.constant 0 : index
    %c0_27 = arith.constant 0 : index
    %32 = vector.load %arg10[%c0_25, %c0_26, %c0_27] : memref<4x8x1xf32, #tpu.memory_space<vmem>>, vector<1x8x1xf32>
    %33 = vector.shape_cast %32 : vector<1x8x1xf32> to vector<8x1xf32>
    %34 = vector.shape_cast %31 : vector<8x1xf32> to vector<1x8x1xf32>
    tpu.vector_store %arg10[%c0_25, %c0_26, %c0_27], %34 {strides = array<i32>} : memref<4x8x1xf32, #tpu.memory_space<vmem>>, vector<1x8x1xf32>,
    %c0_28 = arith.constant 0 : index
    %c0_29 = arith.constant 0 : index
    %c0_30 = arith.constant 0 : index
    %35 = vector.load %arg11[%c0_28, %c0_29, %c0_30] : memref<4x8x32xf32, #tpu.memory_space<vmem>>, vector<1x8x32xf32>
    %36 = vector.shape_cast %35 : vector<1x8x32xf32> to vector<8x32xf32>
    %37 = vector.broadcast %22 : vector<8x1xf32> to vector<8x32xf32>
    %38 = arith.mulf %37, %36 : vector<8x32xf32>
    %cst_31 = arith.constant dense<0.000000e+00> : vector<8x32xf32>
    %39 = tpu.matmul %25, %12, %cst_31 {dimension_numbers = #tpu.dot_dimension_numbers<[1], [0], [0], [1], [0, 0, 1, 1], [], []>} : vector<8x8xf32>, vector<8x32xf32>, vector<8x32xf32> -> vector<8x32xf32>
    %40 = arith.addf %38, %39 : vector<8x32xf32>
    %c0_32 = arith.constant 0 : index
    %c0_33 = arith.constant 0 : index
    %c0_34 = arith.constant 0 : index
    %41 = vector.load %arg11[%c0_32, %c0_33, %c0_34] : memref<4x8x32xf32, #tpu.memory_space<vmem>>, vector<1x8x32xf32>
    %42 = vector.shape_cast %41 : vector<1x8x32xf32> to vector<8x32xf32>
    %43 = vector.shape_cast %40 : vector<8x32xf32> to vector<1x8x32xf32>
    tpu.vector_store %arg11[%c0_32, %c0_33, %c0_34], %43 {strides = array<i32>} : memref<4x8x32xf32, #tpu.memory_space<vmem>>, vector<1x8x32xf32>,
    %c0_35 = arith.constant 0 : index
    %c0_36 = arith.constant 0 : index
    %c0_37 = arith.constant 0 : index
    %44 = vector.load %arg9[%c0_35, %c0_36, %c0_37] : memref<4x8x1xf32, #tpu.memory_space<vmem>>, vector<1x8x1xf32>
    %45 = vector.shape_cast %44 : vector<1x8x1xf32> to vector<8x1xf32>
    %46 = vector.shape_cast %20 : vector<8x1xf32> to vector<1x8x1xf32>
    tpu.vector_store %arg9[%c0_35, %c0_36, %c0_37], %46 {strides = array<i32>} : memref<4x8x1xf32, #tpu.memory_space<vmem>>, vector<1x8x1xf32>,
    %c0_38 = arith.constant 0 : index
    %c1 = arith.constant 1 : index
    %c0_39 = arith.constant 0 : index
    %c0_40 = arith.constant 0 : index
    %47 = vector.load %arg4[%c0_38, %c1, %c0_39, %c0_40] : memref<1x4x8x32xf32, #tpu.memory_space<vmem>>, vector<1x1x8x32xf32>
    %48 = vector.shape_cast %47 : vector<1x1x8x32xf32> to vector<8x32xf32>
    %cst_41 = arith.constant 1.250000e-01 : f32
    %49 = vector.broadcast %cst_41 : f32 to vector<8x32xf32>
    %50 = arith.mulf %48, %49 : vector<8x32xf32>
    %c0_42 = arith.constant 0 : index
    %c1_43 = arith.constant 1 : index
    %c0_44 = arith.constant 0 : index
    %c0_45 = arith.constant 0 : index
    %51 = vector.load %arg5[%c0_42, %c1_43, %c0_44, %c0_45] : memref<1x4x32x8xf32, #tpu.memory_space<vmem>>, vector<1x1x32x8xf32>
    %52 = vector.shape_cast %51 : vector<1x1x32x8xf32> to vector<32x8xf32>
    %c0_46 = arith.constant 0 : index
    %c1_47 = arith.constant 1 : index
    %c0_48 = arith.constant 0 : index
    %c0_49 = arith.constant 0 : index
    %53 = vector.load %arg6[%c0_46, %c1_47, %c0_48, %c0_49] : memref<1x4x8x32xf32, #tpu.memory_space<vmem>>, vector<1x1x8x32xf32>
    %54 = vector.shape_cast %53 : vector<1x1x8x32xf32> to vector<8x32xf32>
    %cst_50 = arith.constant dense<0.000000e+00> : vector<8x8xf32>
    %55 = tpu.matmul %50, %52, %cst_50 {dimension_numbers = #tpu.dot_dimension_numbers<[1], [0], [0], [1], [0, 0, 1, 1], [], []>} : vector<8x32xf32>, vector<32x8xf32>, vector<8x8xf32> -> vector<8x8xf32>
    %56 = vector.broadcast %4 : vector<1x8xf32> to vector<8x8xf32>
    %57 = arith.addf %55, %56 : vector<8x8xf32>
    %c1_51 = arith.constant 1 : index
    %c0_52 = arith.constant 0 : index
    %c0_53 = arith.constant 0 : index
    %58 = vector.load %arg9[%c1_51, %c0_52, %c0_53] : memref<4x8x1xf32, #tpu.memory_space<vmem>>, vector<1x8x1xf32>
    %59 = vector.shape_cast %58 : vector<1x8x1xf32> to vector<8x1xf32>
    %cst_54 = arith.constant dense<0xFF800000> : vector<8xf32>
    %60 = vector.multi_reduction <maximumf>, %57, %cst_54 [1] : vector<8x8xf32> to vector<8xf32>
    %61 = vector.shape_cast %60 : vector<8xf32> to vector<8x1xf32>
    %62 = arith.maximumf %59, %61 : vector<8x1xf32>
    %63 = arith.subf %59, %62 : vector<8x1xf32>
    %64 = math.exp %63 : vector<8x1xf32>
    %65 = vector.broadcast %62 : vector<8x1xf32> to vector<8x8xf32>
    %66 = arith.subf %57, %65 : vector<8x8xf32>
    %67 = math.exp %66 : vector<8x8xf32>
    %c1_55 = arith.constant 1 : index
    %c0_56 = arith.constant 0 : index
    %c0_57 = arith.constant 0 : index
    %68 = vector.load %arg10[%c1_55, %c0_56, %c0_57] : memref<4x8x1xf32, #tpu.memory_space<vmem>>, vector<1x8x1xf32>
    %69 = vector.shape_cast %68 : vector<1x8x1xf32> to vector<8x1xf32>
    %70 = arith.mulf %64, %69 : vector<8x1xf32>
    %cst_58 = arith.constant dense<0.000000e+00> : vector<8xf32>
    %71 = vector.multi_reduction <add>, %67, %cst_58 [1] : vector<8x8xf32> to vector<8xf32>
    %72 = vector.shape_cast %71 : vector<8xf32> to vector<8x1xf32>
    %73 = arith.addf %70, %72 : vector<8x1xf32>
    %c1_59 = arith.constant 1 : index
    %c0_60 = arith.constant 0 : index
    %c0_61 = arith.constant 0 : index
    %74 = vector.load %arg10[%c1_59, %c0_60, %c0_61] : memref<4x8x1xf32, #tpu.memory_space<vmem>>, vector<1x8x1xf32>
    %75 = vector.shape_cast %74 : vector<1x8x1xf32> to vector<8x1xf32>
    %76 = vector.shape_cast %73 : vector<8x1xf32> to vector<1x8x1xf32>
    tpu.vector_store %arg10[%c1_59, %c0_60, %c0_61], %76 {strides = array<i32>} : memref<4x8x1xf32, #tpu.memory_space<vmem>>, vector<1x8x1xf32>,
    %c1_62 = arith.constant 1 : index
    %c0_63 = arith.constant 0 : index
    %c0_64 = arith.constant 0 : index
    %77 = vector.load %arg11[%c1_62, %c0_63, %c0_64] : memref<4x8x32xf32, #tpu.memory_space<vmem>>, vector<1x8x32xf32>
    %78 = vector.shape_cast %77 : vector<1x8x32xf32> to vector<8x32xf32>
    %79 = vector.broadcast %64 : vector<8x1xf32> to vector<8x32xf32>
    %80 = arith.mulf %79, %78 : vector<8x32xf32>
    %cst_65 = arith.constant dense<0.000000e+00> : vector<8x32xf32>
    %81 = tpu.matmul %67, %54, %cst_65 {dimension_numbers = #tpu.dot_dimension_numbers<[1], [0], [0], [1], [0, 0, 1, 1], [], []>} : vector<8x8xf32>, vector<8x32xf32>, vector<8x32xf32> -> vector<8x32xf32>
    %82 = arith.addf %80, %81 : vector<8x32xf32>
    %c1_66 = arith.constant 1 : index
    %c0_67 = arith.constant 0 : index
    %c0_68 = arith.constant 0 : index
    %83 = vector.load %arg11[%c1_66, %c0_67, %c0_68] : memref<4x8x32xf32, #tpu.memory_space<vmem>>, vector<1x8x32xf32>
    %84 = vector.shape_cast %83 : vector<1x8x32xf32> to vector<8x32xf32>
    %85 = vector.shape_cast %82 : vector<8x32xf32> to vector<1x8x32xf32>
    tpu.vector_store %arg11[%c1_66, %c0_67, %c0_68], %85 {strides = array<i32>} : memref<4x8x32xf32, #tpu.memory_space<vmem>>, vector<1x8x32xf32>,
    %c1_69 = arith.constant 1 : index
    %c0_70 = arith.constant 0 : index
    %c0_71 = arith.constant 0 : index
    %86 = vector.load %arg9[%c1_69, %c0_70, %c0_71] : memref<4x8x1xf32, #tpu.memory_space<vmem>>, vector<1x8x1xf32>
    %87 = vector.shape_cast %86 : vector<1x8x1xf32> to vector<8x1xf32>
    %88 = vector.shape_cast %62 : vector<8x1xf32> to vector<1x8x1xf32>
    tpu.vector_store %arg9[%c1_69, %c0_70, %c0_71], %88 {strides = array<i32>} : memref<4x8x1xf32, #tpu.memory_space<vmem>>, vector<1x8x1xf32>,
    %c0_72 = arith.constant 0 : index
    %c2 = arith.constant 2 : index
    %c0_73 = arith.constant 0 : index
    %c0_74 = arith.constant 0 : index
    %89 = vector.load %arg4[%c0_72, %c2, %c0_73, %c0_74] : memref<1x4x8x32xf32, #tpu.memory_space<vmem>>, vector<1x1x8x32xf32>
    %90 = vector.shape_cast %89 : vector<1x1x8x32xf32> to vector<8x32xf32>
    %cst_75 = arith.constant 1.250000e-01 : f32
    %91 = vector.broadcast %cst_75 : f32 to vector<8x32xf32>
    %92 = arith.mulf %90, %91 : vector<8x32xf32>
    %c0_76 = arith.constant 0 : index
    %c2_77 = arith.constant 2 : index
    %c0_78 = arith.constant 0 : index
    %c0_79 = arith.constant 0 : index
    %93 = vector.load %arg5[%c0_76, %c2_77, %c0_78, %c0_79] : memref<1x4x32x8xf32, #tpu.memory_space<vmem>>, vector<1x1x32x8xf32>
    %94 = vector.shape_cast %93 : vector<1x1x32x8xf32> to vector<32x8xf32>
    %c0_80 = arith.constant 0 : index
    %c2_81 = arith.constant 2 : index
    %c0_82 = arith.constant 0 : index
    %c0_83 = arith.constant 0 : index
    %95 = vector.load %arg6[%c0_80, %c2_81, %c0_82, %c0_83] : memref<1x4x8x32xf32, #tpu.memory_space<vmem>>, vector<1x1x8x32xf32>
    %96 = vector.shape_cast %95 : vector<1x1x8x32xf32> to vector<8x32xf32>
    %cst_84 = arith.constant dense<0.000000e+00> : vector<8x8xf32>
    %97 = tpu.matmul %92, %94, %cst_84 {dimension_numbers = #tpu.dot_dimension_numbers<[1], [0], [0], [1], [0, 0, 1, 1], [], []>} : vector<8x32xf32>, vector<32x8xf32>, vector<8x8xf32> -> vector<8x8xf32>
    %98 = vector.broadcast %4 : vector<1x8xf32> to vector<8x8xf32>
    %99 = arith.addf %97, %98 : vector<8x8xf32>
    %c2_85 = arith.constant 2 : index
    %c0_86 = arith.constant 0 : index
    %c0_87 = arith.constant 0 : index
    %100 = vector.load %arg9[%c2_85, %c0_86, %c0_87] : memref<4x8x1xf32, #tpu.memory_space<vmem>>, vector<1x8x1xf32>
    %101 = vector.shape_cast %100 : vector<1x8x1xf32> to vector<8x1xf32>
    %cst_88 = arith.constant dense<0xFF800000> : vector<8xf32>
    %102 = vector.multi_reduction <maximumf>, %99, %cst_88 [1] : vector<8x8xf32> to vector<8xf32>
    %103 = vector.shape_cast %102 : vector<8xf32> to vector<8x1xf32>
    %104 = arith.maximumf %101, %103 : vector<8x1xf32>
    %105 = arith.subf %101, %104 : vector<8x1xf32>
    %106 = math.exp %105 : vector<8x1xf32>
    %107 = vector.broadcast %104 : vector<8x1xf32> to vector<8x8xf32>
    %108 = arith.subf %99, %107 : vector<8x8xf32>
    %109 = math.exp %108 : vector<8x8xf32>
    %c2_89 = arith.constant 2 : index
    %c0_90 = arith.constant 0 : index
    %c0_91 = arith.constant 0 : index
    %110 = vector.load %arg10[%c2_89, %c0_90, %c0_91] : memref<4x8x1xf32, #tpu.memory_space<vmem>>, vector<1x8x1xf32>
    %111 = vector.shape_cast %110 : vector<1x8x1xf32> to vector<8x1xf32>
    %112 = arith.mulf %106, %111 : vector<8x1xf32>
    %cst_92 = arith.constant dense<0.000000e+00> : vector<8xf32>
    %113 = vector.multi_reduction <add>, %109, %cst_92 [1] : vector<8x8xf32> to vector<8xf32>
    %114 = vector.shape_cast %113 : vector<8xf32> to vector<8x1xf32>
    %115 = arith.addf %112, %114 : vector<8x1xf32>
    %c2_93 = arith.constant 2 : index
    %c0_94 = arith.constant 0 : index
    %c0_95 = arith.constant 0 : index
    %116 = vector.load %arg10[%c2_93, %c0_94, %c0_95] : memref<4x8x1xf32, #tpu.memory_space<vmem>>, vector<1x8x1xf32>
    %117 = vector.shape_cast %116 : vector<1x8x1xf32> to vector<8x1xf32>
    %118 = vector.shape_cast %115 : vector<8x1xf32> to vector<1x8x1xf32>
    tpu.vector_store %arg10[%c2_93, %c0_94, %c0_95], %118 {strides = array<i32>} : memref<4x8x1xf32, #tpu.memory_space<vmem>>, vector<1x8x1xf32>,
    %c2_96 = arith.constant 2 : index
    %c0_97 = arith.constant 0 : index
    %c0_98 = arith.constant 0 : index
    %119 = vector.load %arg11[%c2_96, %c0_97, %c0_98] : memref<4x8x32xf32, #tpu.memory_space<vmem>>, vector<1x8x32xf32>
    %120 = vector.shape_cast %119 : vector<1x8x32xf32> to vector<8x32xf32>
    %121 = vector.broadcast %106 : vector<8x1xf32> to vector<8x32xf32>
    %122 = arith.mulf %121, %120 : vector<8x32xf32>
    %cst_99 = arith.constant dense<0.000000e+00> : vector<8x32xf32>
    %123 = tpu.matmul %109, %96, %cst_99 {dimension_numbers = #tpu.dot_dimension_numbers<[1], [0], [0], [1], [0, 0, 1, 1], [], []>} : vector<8x8xf32>, vector<8x32xf32>, vector<8x32xf32> -> vector<8x32xf32>
    %124 = arith.addf %122, %123 : vector<8x32xf32>
    %c2_100 = arith.constant 2 : index
    %c0_101 = arith.constant 0 : index
    %c0_102 = arith.constant 0 : index
    %125 = vector.load %arg11[%c2_100, %c0_101, %c0_102] : memref<4x8x32xf32, #tpu.memory_space<vmem>>, vector<1x8x32xf32>
    %126 = vector.shape_cast %125 : vector<1x8x32xf32> to vector<8x32xf32>
    %127 = vector.shape_cast %124 : vector<8x32xf32> to vector<1x8x32xf32>
    tpu.vector_store %arg11[%c2_100, %c0_101, %c0_102], %127 {strides = array<i32>} : memref<4x8x32xf32, #tpu.memory_space<vmem>>, vector<1x8x32xf32>,
    %c2_103 = arith.constant 2 : index
    %c0_104 = arith.constant 0 : index
    %c0_105 = arith.constant 0 : index
    %128 = vector.load %arg9[%c2_103, %c0_104, %c0_105] : memref<4x8x1xf32, #tpu.memory_space<vmem>>, vector<1x8x1xf32>
    %129 = vector.shape_cast %128 : vector<1x8x1xf32> to vector<8x1xf32>
    %130 = vector.shape_cast %104 : vector<8x1xf32> to vector<1x8x1xf32>
    tpu.vector_store %arg9[%c2_103, %c0_104, %c0_105], %130 {strides = array<i32>} : memref<4x8x1xf32, #tpu.memory_space<vmem>>, vector<1x8x1xf32>,
    %c0_106 = arith.constant 0 : index
    %c3 = arith.constant 3 : index
    %c0_107 = arith.constant 0 : index
    %c0_108 = arith.constant 0 : index
    %131 = vector.load %arg4[%c0_106, %c3, %c0_107, %c0_108] : memref<1x4x8x32xf32, #tpu.memory_space<vmem>>, vector<1x1x8x32xf32>
    %132 = vector.shape_cast %131 : vector<1x1x8x32xf32> to vector<8x32xf32>
    %cst_109 = arith.constant 1.250000e-01 : f32
    %133 = vector.broadcast %cst_109 : f32 to vector<8x32xf32>
    %134 = arith.mulf %132, %133 : vector<8x32xf32>
    %c0_110 = arith.constant 0 : index
    %c3_111 = arith.constant 3 : index
    %c0_112 = arith.constant 0 : index
    %c0_113 = arith.constant 0 : index
    %135 = vector.load %arg5[%c0_110, %c3_111, %c0_112, %c0_113] : memref<1x4x32x8xf32, #tpu.memory_space<vmem>>, vector<1x1x32x8xf32>
    %136 = vector.shape_cast %135 : vector<1x1x32x8xf32> to vector<32x8xf32>
    %c0_114 = arith.constant 0 : index
    %c3_115 = arith.constant 3 : index
    %c0_116 = arith.constant 0 : index
    %c0_117 = arith.constant 0 : index
    %137 = vector.load %arg6[%c0_114, %c3_115, %c0_116, %c0_117] : memref<1x4x8x32xf32, #tpu.memory_space<vmem>>, vector<1x1x8x32xf32>
    %138 = vector.shape_cast %137 : vector<1x1x8x32xf32> to vector<8x32xf32>
    %cst_118 = arith.constant dense<0.000000e+00> : vector<8x8xf32>
    %139 = tpu.matmul %134, %136, %cst_118 {dimension_numbers = #tpu.dot_dimension_numbers<[1], [0], [0], [1], [0, 0, 1, 1], [], []>} : vector<8x32xf32>, vector<32x8xf32>, vector<8x8xf32> -> vector<8x8xf32>
    %140 = vector.broadcast %4 : vector<1x8xf32> to vector<8x8xf32>
    %141 = arith.addf %139, %140 : vector<8x8xf32>
    %c3_119 = arith.constant 3 : index
    %c0_120 = arith.constant 0 : index
    %c0_121 = arith.constant 0 : index
    %142 = vector.load %arg9[%c3_119, %c0_120, %c0_121] : memref<4x8x1xf32, #tpu.memory_space<vmem>>, vector<1x8x1xf32>
    %143 = vector.shape_cast %142 : vector<1x8x1xf32> to vector<8x1xf32>
    %cst_122 = arith.constant dense<0xFF800000> : vector<8xf32>
    %144 = vector.multi_reduction <maximumf>, %141, %cst_122 [1] : vector<8x8xf32> to vector<8xf32>
    %145 = vector.shape_cast %144 : vector<8xf32> to vector<8x1xf32>
    %146 = arith.maximumf %143, %145 : vector<8x1xf32>
    %147 = arith.subf %143, %146 : vector<8x1xf32>
    %148 = math.exp %147 : vector<8x1xf32>
    %149 = vector.broadcast %146 : vector<8x1xf32> to vector<8x8xf32>
    %150 = arith.subf %141, %149 : vector<8x8xf32>
    %151 = math.exp %150 : vector<8x8xf32>
    %c3_123 = arith.constant 3 : index
    %c0_124 = arith.constant 0 : index
    %c0_125 = arith.constant 0 : index
    %152 = vector.load %arg10[%c3_123, %c0_124, %c0_125] : memref<4x8x1xf32, #tpu.memory_space<vmem>>, vector<1x8x1xf32>
    %153 = vector.shape_cast %152 : vector<1x8x1xf32> to vector<8x1xf32>
    %154 = arith.mulf %148, %153 : vector<8x1xf32>
    %cst_126 = arith.constant dense<0.000000e+00> : vector<8xf32>
    %155 = vector.multi_reduction <add>, %151, %cst_126 [1] : vector<8x8xf32> to vector<8xf32>
    %156 = vector.shape_cast %155 : vector<8xf32> to vector<8x1xf32>
    %157 = arith.addf %154, %156 : vector<8x1xf32>
    %c3_127 = arith.constant 3 : index
    %c0_128 = arith.constant 0 : index
    %c0_129 = arith.constant 0 : index
    %158 = vector.load %arg10[%c3_127, %c0_128, %c0_129] : memref<4x8x1xf32, #tpu.memory_space<vmem>>, vector<1x8x1xf32>
    %159 = vector.shape_cast %158 : vector<1x8x1xf32> to vector<8x1xf32>
    %160 = vector.shape_cast %157 : vector<8x1xf32> to vector<1x8x1xf32>
    tpu.vector_store %arg10[%c3_127, %c0_128, %c0_129], %160 {strides = array<i32>} : memref<4x8x1xf32, #tpu.memory_space<vmem>>, vector<1x8x1xf32>,
    %c3_130 = arith.constant 3 : index
    %c0_131 = arith.constant 0 : index
    %c0_132 = arith.constant 0 : index
    %161 = vector.load %arg11[%c3_130, %c0_131, %c0_132] : memref<4x8x32xf32, #tpu.memory_space<vmem>>, vector<1x8x32xf32>
    %162 = vector.shape_cast %161 : vector<1x8x32xf32> to vector<8x32xf32>
    %163 = vector.broadcast %148 : vector<8x1xf32> to vector<8x32xf32>
    %164 = arith.mulf %163, %162 : vector<8x32xf32>
    %cst_133 = arith.constant dense<0.000000e+00> : vector<8x32xf32>
    %165 = tpu.matmul %151, %138, %cst_133 {dimension_numbers = #tpu.dot_dimension_numbers<[1], [0], [0], [1], [0, 0, 1, 1], [], []>} : vector<8x8xf32>, vector<8x32xf32>, vector<8x32xf32> -> vector<8x32xf32>
    %166 = arith.addf %164, %165 : vector<8x32xf32>
    %c3_134 = arith.constant 3 : index
    %c0_135 = arith.constant 0 : index
    %c0_136 = arith.constant 0 : index
    %167 = vector.load %arg11[%c3_134, %c0_135, %c0_136] : memref<4x8x32xf32, #tpu.memory_space<vmem>>, vector<1x8x32xf32>
    %168 = vector.shape_cast %167 : vector<1x8x32xf32> to vector<8x32xf32>
    %169 = vector.shape_cast %166 : vector<8x32xf32> to vector<1x8x32xf32>
    tpu.vector_store %arg11[%c3_134, %c0_135, %c0_136], %169 {strides = array<i32>} : memref<4x8x32xf32, #tpu.memory_space<vmem>>, vector<1x8x32xf32>,
    %c3_137 = arith.constant 3 : index
    %c0_138 = arith.constant 0 : index
    %c0_139 = arith.constant 0 : index
    %170 = vector.load %arg9[%c3_137, %c0_138, %c0_139] : memref<4x8x1xf32, #tpu.memory_space<vmem>>, vector<1x8x1xf32>
    %171 = vector.shape_cast %170 : vector<1x8x1xf32> to vector<8x1xf32>
    %172 = vector.shape_cast %146 : vector<8x1xf32> to vector<1x8x1xf32>
    tpu.vector_store %arg9[%c3_137, %c0_138, %c0_139], %172 {strides = array<i32>} : memref<4x8x1xf32, #tpu.memory_space<vmem>>, vector<1x8x1xf32>,
    %c0_i32_140 = arith.constant 0 : i32
    %173 = arith.cmpi eq, %arg3, %c0_i32_140 : i32
    %174 = arith.extui %173 : i1 to i32
    %c0_i32_141 = arith.constant 0 : i32
    %175 = arith.cmpi ne, %174, %c0_i32_141 : i32
    scf.if %175 {
      %c0_142 = arith.constant 0 : index
      %c0_143 = arith.constant 0 : index
      %c0_144 = arith.constant 0 : index
      %176 = vector.load %arg10[%c0_142, %c0_143, %c0_144] : memref<4x8x1xf32, #tpu.memory_space<vmem>>, vector<1x8x1xf32>
      %177 = vector.shape_cast %176 : vector<1x8x1xf32> to vector<8x1xf32>
      %cst_145 = arith.constant 1.000000e+00 : f32
      %178 = vector.broadcast %cst_145 : f32 to vector<8x1xf32>
      %179 = arith.divf %178, %177 : vector<8x1xf32>
      %c0_146 = arith.constant 0 : index
      %c0_147 = arith.constant 0 : index
      %c0_148 = arith.constant 0 : index
      %180 = vector.load %arg11[%c0_146, %c0_147, %c0_148] : memref<4x8x32xf32, #tpu.memory_space<vmem>>, vector<1x8x32xf32>
      %181 = vector.shape_cast %180 : vector<1x8x32xf32> to vector<8x32xf32>
      %182 = vector.broadcast %179 : vector<8x1xf32> to vector<8x32xf32>
      %183 = arith.mulf %181, %182 : vector<8x32xf32>
      %c0_149 = arith.constant 0 : index
      %c0_150 = arith.constant 0 : index
      %c0_151 = arith.constant 0 : index
      %c0_152 = arith.constant 0 : index
      %184 = vector.load %arg8[%c0_149, %c0_150, %c0_151, %c0_152] : memref<1x4x8x32xf32, #tpu.memory_space<vmem>>, vector<1x1x8x32xf32>
      %185 = vector.shape_cast %184 : vector<1x1x8x32xf32> to vector<8x32xf32>
      %186 = vector.shape_cast %183 : vector<8x32xf32> to vector<1x1x8x32xf32>
      tpu.vector_store %arg8[%c0_149, %c0_150, %c0_151, %c0_152], %186 {strides = array<i32>} : memref<1x4x8x32xf32, #tpu.memory_space<vmem>>, vector<1x1x8x32xf32>,
      %c1_153 = arith.constant 1 : index
      %c0_154 = arith.constant 0 : index
      %c0_155 = arith.constant 0 : index
      %187 = vector.load %arg10[%c1_153, %c0_154, %c0_155] : memref<4x8x1xf32, #tpu.memory_space<vmem>>, vector<1x8x1xf32>
      %188 = vector.shape_cast %187 : vector<1x8x1xf32> to vector<8x1xf32>
      %cst_156 = arith.constant 1.000000e+00 : f32
      %189 = vector.broadcast %cst_156 : f32 to vector<8x1xf32>
      %190 = arith.divf %189, %188 : vector<8x1xf32>
      %c1_157 = arith.constant 1 : index
      %c0_158 = arith.constant 0 : index
      %c0_159 = arith.constant 0 : index
      %191 = vector.load %arg11[%c1_157, %c0_158, %c0_159] : memref<4x8x32xf32, #tpu.memory_space<vmem>>, vector<1x8x32xf32>
      %192 = vector.shape_cast %191 : vector<1x8x32xf32> to vector<8x32xf32>
      %193 = vector.broadcast %190 : vector<8x1xf32> to vector<8x32xf32>
      %194 = arith.mulf %192, %193 : vector<8x32xf32>
      %c0_160 = arith.constant 0 : index
      %c1_161 = arith.constant 1 : index
      %c0_162 = arith.constant 0 : index
      %c0_163 = arith.constant 0 : index
      %195 = vector.load %arg8[%c0_160, %c1_161, %c0_162, %c0_163] : memref<1x4x8x32xf32, #tpu.memory_space<vmem>>, vector<1x1x8x32xf32>
      %196 = vector.shape_cast %195 : vector<1x1x8x32xf32> to vector<8x32xf32>
      %197 = vector.shape_cast %194 : vector<8x32xf32> to vector<1x1x8x32xf32>
      tpu.vector_store %arg8[%c0_160, %c1_161, %c0_162, %c0_163], %197 {strides = array<i32>} : memref<1x4x8x32xf32, #tpu.memory_space<vmem>>, vector<1x1x8x32xf32>,
      %c2_164 = arith.constant 2 : index
      %c0_165 = arith.constant 0 : index
      %c0_166 = arith.constant 0 : index
      %198 = vector.load %arg10[%c2_164, %c0_165, %c0_166] : memref<4x8x1xf32, #tpu.memory_space<vmem>>, vector<1x8x1xf32>
      %199 = vector.shape_cast %198 : vector<1x8x1xf32> to vector<8x1xf32>
      %cst_167 = arith.constant 1.000000e+00 : f32
      %200 = vector.broadcast %cst_167 : f32 to vector<8x1xf32>
      %201 = arith.divf %200, %199 : vector<8x1xf32>
      %c2_168 = arith.constant 2 : index
      %c0_169 = arith.constant 0 : index
      %c0_170 = arith.constant 0 : index
      %202 = vector.load %arg11[%c2_168, %c0_169, %c0_170] : memref<4x8x32xf32, #tpu.memory_space<vmem>>, vector<1x8x32xf32>
      %203 = vector.shape_cast %202 : vector<1x8x32xf32> to vector<8x32xf32>
      %204 = vector.broadcast %201 : vector<8x1xf32> to vector<8x32xf32>
      %205 = arith.mulf %203, %204 : vector<8x32xf32>
      %c0_171 = arith.constant 0 : index
      %c2_172 = arith.constant 2 : index
      %c0_173 = arith.constant 0 : index
      %c0_174 = arith.constant 0 : index
      %206 = vector.load %arg8[%c0_171, %c2_172, %c0_173, %c0_174] : memref<1x4x8x32xf32, #tpu.memory_space<vmem>>, vector<1x1x8x32xf32>
      %207 = vector.shape_cast %206 : vector<1x1x8x32xf32> to vector<8x32xf32>
      %208 = vector.shape_cast %205 : vector<8x32xf32> to vector<1x1x8x32xf32>
      tpu.vector_store %arg8[%c0_171, %c2_172, %c0_173, %c0_174], %208 {strides = array<i32>} : memref<1x4x8x32xf32, #tpu.memory_space<vmem>>, vector<1x1x8x32xf32>,
      %c3_175 = arith.constant 3 : index
      %c0_176 = arith.constant 0 : index
      %c0_177 = arith.constant 0 : index
      %209 = vector.load %arg10[%c3_175, %c0_176, %c0_177] : memref<4x8x1xf32, #tpu.memory_space<vmem>>, vector<1x8x1xf32>
      %210 = vector.shape_cast %209 : vector<1x8x1xf32> to vector<8x1xf32>
      %cst_178 = arith.constant 1.000000e+00 : f32
      %211 = vector.broadcast %cst_178 : f32 to vector<8x1xf32>
      %212 = arith.divf %211, %210 : vector<8x1xf32>
      %c3_179 = arith.constant 3 : index
      %c0_180 = arith.constant 0 : index
      %c0_181 = arith.constant 0 : index
      %213 = vector.load %arg11[%c3_179, %c0_180, %c0_181] : memref<4x8x32xf32, #tpu.memory_space<vmem>>, vector<1x8x32xf32>
      %214 = vector.shape_cast %213 : vector<1x8x32xf32> to vector<8x32xf32>
      %215 = vector.broadcast %212 : vector<8x1xf32> to vector<8x32xf32>
      %216 = arith.mulf %214, %215 : vector<8x32xf32>
      %c0_182 = arith.constant 0 : index
      %c3_183 = arith.constant 3 : index
      %c0_184 = arith.constant 0 : index
      %c0_185 = arith.constant 0 : index
      %217 = vector.load %arg8[%c0_182, %c3_183, %c0_184, %c0_185] : memref<1x4x8x32xf32, #tpu.memory_space<vmem>>, vector<1x1x8x32xf32>
      %218 = vector.shape_cast %217 : vector<1x1x8x32xf32> to vector<8x32xf32>
      %219 = vector.shape_cast %216 : vector<8x32xf32> to vector<1x1x8x32xf32>
      tpu.vector_store %arg8[%c0_182, %c3_183, %c0_184, %c0_185], %219 {strides = array<i32>} : memref<1x4x8x32xf32, #tpu.memory_space<vmem>>, vector<1x1x8x32xf32>,
    } else {
    }
    return
  }
  func.func @transform_0(%arg0: i32, %arg1: i32, %arg2: i32, %arg3: i32) -> (i32, i32, i32, i32) {
    %c0_i32 = arith.constant 0 : i32
    %c0_i32_0 = arith.constant 0 : i32
    return %arg0, %arg1, %arg2, %c0_i32 : i32, i32, i32, i32
  }
  func.func @transform_1(%arg0: i32, %arg1: i32, %arg2: i32, %arg3: i32) -> (i32, i32, i32, i32) {
    %c0_i32 = arith.constant 0 : i32
    %c0_i32_0 = arith.constant 0 : i32
    return %arg0, %arg1, %c0_i32, %arg3 : i32, i32, i32, i32
  }
  func.func @transform_2(%arg0: i32, %arg1: i32, %arg2: i32, %arg3: i32) -> (i32, i32, i32, i32) {
    %c0_i32 = arith.constant 0 : i32
    %c0_i32_0 = arith.constant 0 : i32
    return %arg0, %arg1, %arg3, %c0_i32 : i32, i32, i32, i32
  }
  func.func @transform_3(%arg0: i32, %arg1: i32, %arg2: i32, %arg3: i32) -> (i32, i32, i32, i32) {
    %c0_i32 = arith.constant 0 : i32
    %c0_i32_0 = arith.constant 0 : i32
    %c0_i32_1 = arith.constant 0 : i32
    return %arg0, %c0_i32, %c0_i32_0, %arg3 : i32, i32, i32, i32
  }
  func.func @transform_4(%arg0: i32, %arg1: i32, %arg2: i32, %arg3: i32) -> (i32, i32, i32, i32) {
    %c0_i32 = arith.constant 0 : i32
    %c0_i32_0 = arith.constant 0 : i32
    return %arg0, %arg1, %arg2, %c0_i32 : i32, i32, i32, i32
  }
}

</mosaic_0001>

<llo_original>
// kernel: tpu_custom_call.1
$region0: #{tpu_custom_call.1}
  #allocation0 [shape = 'u32[]', space=smem, size = 0x4, offset = 0x4, fixed_abs, tag = 'smem constant byte address 0x4 - core index']
  #allocation1 [shape = 'u32[144,128]{1,0:T(1,128)}', space=vmem, size = 0x12000, scoped, tag = 'internal scratch']
  #allocation2 [shape = 'f32[4,8,1]{2,1,0:T(8,128)}', space=vmem, size = 0x4000, scoped, tag = 'scratch operand']
  #allocation3 [shape = 'f32[4,8,1]{2,1,0:T(8,128)}', space=vmem, size = 0x4000, scoped, tag = 'scratch operand']
  #allocation4 [shape = 'f32[4,8,32]{2,1,0:T(8,128)}', space=vmem, size = 0x4000, scoped, tag = 'scratch operand']
  %s0 = inlined_call_operand.hbm [shape: f32[2,4,8,32], index: 0, kind: input, shape index: {}]
  %s1 = inlined_call_operand.hbm [shape: f32[2,4,32,8], index: 1, kind: input, shape index: {}]
  %s2 = inlined_call_operand.hbm [shape: f32[2,4,8,32], index: 2, kind: input, shape index: {}]
  %s3 = inlined_call_operand.hbm [shape: f32[2,1,1,8], index: 3, kind: input, shape index: {}]
  %s4 = inlined_call_operand.hbm [shape: f32[2,4,8,32], index: 4, kind: output, shape index: {}]
  %s5 = sld [smem:[#allocation0]]
  $region73: #{tpu_custom_call.1} parent=0
    _
  %s7 = ssub.s32 1, %s5
  %s8 = scalar_select 0, %s7, %s5
  $region1: #{tpu_custom_call.1} parent=0
    #allocation5 [shape = 'u8[32768]{0}', space=vmem, size = 0x8000, scoped, tag = 'input window, operand 0']
    #allocation6 [shape = 's32[2]{0}', space=sflag, size = 0x8, scoped, tag = 'scoped memory for tpu_custom_call.1']
    #allocation7 [shape = 's32[2]{0}', space=sflag, size = 0x8, scoped, tag = 'scoped memory for tpu_custom_call.1']
    #allocation8 [shape = 'u8[131072]{0}', space=vmem, size = 0x20000, scoped, tag = 'input window, operand 1']
    #allocation9 [shape = 's32[2]{0}', space=sflag, size = 0x8, scoped, tag = 'scoped memory for tpu_custom_call.1']
    #allocation10 [shape = 'u8[32768]{0}', space=vmem, size = 0x8000, scoped, tag = 'input window, operand 2']
    #allocation11 [shape = 'u8[1024]{0}', space=vmem, size = 0x400, scoped, tag = 'input window, operand 3']
    #allocation12 [shape = 's32[2]{0}', space=sflag, size = 0x8, scoped, tag = 'scoped memory for tpu_custom_call.1']
    #allocation13 [shape = 'u8[32768]{0}', space=vmem, size = 0x8000, scoped, tag = 'output window, operand 0']
    %9 = vsyncpa [#allocation6], 0
    %s10 = scalar_lea.sflag [#allocation6], 1
    %11 = vsyncpa %s10, 0
    %12 = vsyncpa [#allocation9], 0
    %s13 = scalar_lea.sflag [#allocation9], 1
    %14 = vsyncpa %s13, 0
    %15 = vsyncpa [#allocation12], 0
    %s16 = scalar_lea.sflag [#allocation12], 1
    %17 = vsyncpa %s16, 0
    %18 = vsyncpa [#allocation7], 0
    %s19 = scalar_lea.sflag [#allocation7], 1
    %20 = vsyncpa %s19, 0
    loop: start=0, step=1, limit=4
    $region2: #{tpu_custom_call.1} parent=1 // loop_pre_header
      _
    $region3: #{tpu_custom_call.1} parent=1 // loop_header
      %s22 = sphi 0, %s26
      %p23 = scmp.ge.s32.totalorder %s22, 4
      %s29 = sphi 0, %s55
      %s30 = sphi 0, %s51
      %s31 = sphi 0, %s47
      %s32 = sphi 0, %s43
      %s33 = sphi 0, %s29
      %s34 = sphi 0, %s30
      %s35 = sphi 0, %s31
      %s36 = sphi 0, %s32
      %s37 = sphi 0, %s33
      %s38 = sphi 0, %s34
      %s39 = sphi 0, %s35
      %s40 = sphi 0, %s36
      %s62 = sphi 0, %s64
      %s65 = sphi 0, %s62
      %s66 = sphi 0, %s65
      %s82 = sphi 0, %s66
      %s92 = sphi 0, %s94
      %s95 = sphi 0, %s92
      %s96 = sphi 0, %s95
      %s112 = sphi 0, %s96
      %s122 = sphi 0, %s124
      %s125 = sphi 0, %s122
      %s126 = sphi 0, %s125
      %s142 = sphi 0, %s126
      %s150 = sphi 0, %s152
      %s153 = sphi 0, %s150
      %s154 = sphi 0, %s153
      %s170 = sphi 0, %s154
      %s180 = sphi 0, %s182
      %s183 = sphi 0, %s180
      %s184 = sphi 0, %s183
      %s200 = sphi 0, %s184
    $region4: #{tpu_custom_call.1} parent=1 // loop_header_branch
      %25 = sbr.rel (%p23) target = $region8
    $region5: #{tpu_custom_call.1} parent=1 // loop_body
      %s27 = ssub.s32 %s22, 1
      %s28 = ssub.s32 %s22, 2
      %s41 = sadd.s32 1, %s32
      %p42 = scmp.ge.s32.totalorder %s41, 1
      %s43 = scalar_select %p42, 0, %s41
      %s44 = sadd.s32 1, %s31
      %s45 = scalar_select %p42, %s44, %s31
      %p46 = scmp.ge.s32.totalorder %s45, 1
      %s47 = scalar_select %p46, 0, %s45
      %s48 = sadd.s32 1, %s30
      %s49 = scalar_select %p46, %s48, %s30
      %p50 = scmp.ge.s32.totalorder %s49, 1
      %s51 = scalar_select %p50, 0, %s49
      %s52 = sadd.s32 1, %s29
      %s53 = scalar_select %p50, %s52, %s29
      %p54 = scmp.ge.s32.totalorder %s53, 2
      %s55 = scalar_select %p54, 0, %s53
      %s56 = ssub.s32 %s29, %s55
      %s57 = ssub.s32 %s30, %s51
      %s58 = sor.u32 %s56, %s57
      %s59 = ssub.s32 %s31, %s47
      %s60 = sor.u32 %s58, %s59
      %p61 = scmp.eq.s32.totalorder %s60, 0
      %s63 = sadd.s32 %s62, 1
      %s64 = scalar_select %p61, %s62, %s63
      %p67 = pneg %p61
      %p68 = scmp.eq.s32.totalorder %s22, 1
      %p69 = por %p67, %p68
      %p70 = scmp.ne.s32.totalorder %s62, %s65
      %p71 = scmp.eq.s32.totalorder %s22, 0
      %p72 = por %p70, %p71
      %p73 = scmp.ne.s32.totalorder %s62, %s65
      %p74 = scmp.eq.s32.totalorder %s27, 1
      %p75 = por %p73, %p74
      %p76 = scmp.ne.s32.totalorder %s65, %s66
      %p77 = scmp.eq.s32.totalorder %s27, 0
      %p78 = por %p76, %p77
      %p79 = scmp.ne.s32.totalorder %s65, %s66
      %p80 = scmp.eq.s32.totalorder %s28, 1
      %p81 = por %p79, %p80
      %p83 = scmp.ne.s32.totalorder %s66, %s82
      %p84 = scmp.eq.s32.totalorder %s28, 0
      %p85 = por %p83, %p84
      %s86 = ssub.s32 %s29, %s55
      %s87 = ssub.s32 %s30, %s51
      %s88 = sor.u32 %s86, %s87
      %s89 = ssub.s32 %s32, %s43
      %s90 = sor.u32 %s88, %s89
      %p91 = scmp.eq.s32.totalorder %s90, 0
      %s93 = sadd.s32 %s92, 1
      %s94 = scalar_select %p91, %s92, %s93
      %p97 = pneg %p91
      %p98 = scmp.eq.s32.totalorder %s22, 1
      %p99 = por %p97, %p98
      %p100 = scmp.ne.s32.totalorder %s92, %s95
      %p101 = scmp.eq.s32.totalorder %s22, 0
      %p102 = por %p100, %p101
      %p103 = scmp.ne.s32.totalorder %s92, %s95
      %p104 = scmp.eq.s32.totalorder %s27, 1
      %p105 = por %p103, %p104
      %p106 = scmp.ne.s32.totalorder %s95, %s96
      %p107 = scmp.eq.s32.totalorder %s27, 0
      %p108 = por %p106, %p107
      %p109 = scmp.ne.s32.totalorder %s95, %s96
      %p110 = scmp.eq.s32.totalorder %s28, 1
      %p111 = por %p109, %p110
      %p113 = scmp.ne.s32.totalorder %s96, %s112
      %p114 = scmp.eq.s32.totalorder %s28, 0
      %p115 = por %p113, %p114
      %s116 = ssub.s32 %s29, %s55
      %s117 = ssub.s32 %s30, %s51
      %s118 = sor.u32 %s116, %s117
      %s119 = ssub.s32 %s32, %s43
      %s120 = sor.u32 %s118, %s119
      %p121 = scmp.eq.s32.totalorder %s120, 0
      %s123 = sadd.s32 %s122, 1
      %s124 = scalar_select %p121, %s122, %s123
      %p127 = pneg %p121
      %p128 = scmp.eq.s32.totalorder %s22, 1
      %p129 = por %p127, %p128
      %p130 = scmp.ne.s32.totalorder %s122, %s125
      %p131 = scmp.eq.s32.totalorder %s22, 0
      %p132 = por %p130, %p131
      %p133 = scmp.ne.s32.totalorder %s122, %s125
      %p134 = scmp.eq.s32.totalorder %s27, 1
      %p135 = por %p133, %p134
      %p136 = scmp.ne.s32.totalorder %s125, %s126
      %p137 = scmp.eq.s32.totalorder %s27, 0
      %p138 = por %p136, %p137
      %p139 = scmp.ne.s32.totalorder %s125, %s126
      %p140 = scmp.eq.s32.totalorder %s28, 1
      %p141 = por %p139, %p140
      %p143 = scmp.ne.s32.totalorder %s126, %s142
      %p144 = scmp.eq.s32.totalorder %s28, 0
      %p145 = por %p143, %p144
      %s146 = ssub.s32 %s29, %s55
      %s147 = ssub.s32 %s32, %s43
      %s148 = sor.u32 %s146, %s147
      %p149 = scmp.eq.s32.totalorder %s148, 0
      %s151 = sadd.s32 %s150, 1
      %s152 = scalar_select %p149, %s150, %s151
      %p155 = pneg %p149
      %p156 = scmp.eq.s32.totalorder %s22, 1
      %p157 = por %p155, %p156
      %p158 = scmp.ne.s32.totalorder %s150, %s153
      %p159 = scmp.eq.s32.totalorder %s22, 0
      %p160 = por %p158, %p159
      %p161 = scmp.ne.s32.totalorder %s150, %s153
      %p162 = scmp.eq.s32.totalorder %s27, 1
      %p163 = por %p161, %p162
      %p164 = scmp.ne.s32.totalorder %s153, %s154
      %p165 = scmp.eq.s32.totalorder %s27, 0
      %p166 = por %p164, %p165
      %p167 = scmp.ne.s32.totalorder %s153, %s154
      %p168 = scmp.eq.s32.totalorder %s28, 1
      %p169 = por %p167, %p168
      %p171 = scmp.ne.s32.totalorder %s154, %s170
      %p172 = scmp.eq.s32.totalorder %s28, 0
      %p173 = por %p171, %p172
      %s174 = ssub.s32 %s29, %s55
      %s175 = ssub.s32 %s30, %s51
      %s176 = sor.u32 %s174, %s175
      %s177 = ssub.s32 %s31, %s47
      %s178 = sor.u32 %s176, %s177
      %p179 = scmp.eq.s32.totalorder %s178, 0
      %s181 = sadd.s32 %s180, 1
      %s182 = scalar_select %p179, %s180, %s181
      %p185 = pneg %p179
      %p186 = scmp.eq.s32.totalorder %s22, 1
      %p187 = por %p185, %p186
      %p188 = scmp.ne.s32.totalorder %s180, %s183
      %p189 = scmp.eq.s32.totalorder %s22, 0
      %p190 = por %p188, %p189
      %p191 = scmp.ne.s32.totalorder %s180, %s183
      %p192 = scmp.eq.s32.totalorder %s27, 1
      %p193 = por %p191, %p192
      %p194 = scmp.ne.s32.totalorder %s183, %s184
      %p195 = scmp.eq.s32.totalorder %s27, 0
      %p196 = por %p194, %p195
      %p197 = scmp.ne.s32.totalorder %s183, %s184
      %p198 = scmp.eq.s32.totalorder %s28, 1
      %p199 = por %p197, %p198
      %p201 = scmp.ne.s32.totalorder %s184, %s200
      %p202 = scmp.eq.s32.totalorder %s28, 0
      %p203 = por %p201, %p202
      %p204 = scmp.le.s32.totalorder 1, %s22
      %p205 = scmp.lt.s32.totalorder %s22, 3
      %p206 = pnand %p204, %p205
      %p207 = pneg %p206
      // Predicated region
      $region9: #{tpu_custom_call.1} parent=5 // pred_check
        _
      $region10: #{tpu_custom_call.1} parent=5 // pred_check_branch
        %209 = sbr.rel (%p206) target = $region12
      $region11: #{tpu_custom_call.1} parent=5 // pred_region
        %s210 = ssub.s32 %s22, 1
      $region12: #{tpu_custom_call.1} parent=5 // pred_fallthru
        _
      %p211 = scmp.lt.s32.totalorder %s22, 2
      // Predicated region
      $region13: #{tpu_custom_call.1} parent=5 // pred_check
        %p212 = pneg %p211
      $region14: #{tpu_custom_call.1} parent=5 // pred_check_branch
        %214 = sbr.rel (%p212) target = $region16
      $region15: #{tpu_custom_call.1} parent=5 // pred_region
        // Predicated region
        $region17: #{tpu_custom_call.1} parent=15 // pred_check
          %p215 = pneg %p72
        $region18: #{tpu_custom_call.1} parent=15 // pred_check_branch
          %217 = sbr.rel (%p215) target = $region20
        $region19: #{tpu_custom_call.1} parent=15 // pred_region
          %s218 = sand.u32 %s62, 1
          %s219 = scalar_lea.sflag [#allocation6], %s218
          %s220 = sand.u32 %s62, 1
          %s221 = smul.addr %s220, 32
          %s222 = scalar_lea.vmem [#allocation5], %s221
          %s223 = smul.u32 4, %s30
          %s225 = ssub.s32 512, 512
          %226 = vsyncadd %s219, %s225
          %s227 = sadd.s32 %s31, %s223
          %s228 = smul.addr %s29, 4
          %s229 = sadd.s32 %s227, %s228
          %s230 = smul.addr %s229, 128
          %s231 = scalar_lea.hbm %s0, %s230
          %s232 = sshll.u32 %s222, 4
          %s233 = int_to_ptr.vmem [resolvable:$true] %s232
          %238 = dma.hbm_to_vmem [thread:$0]  %s231, 512, %s233, %s219, 128, 128, 8
        $region20: #{tpu_custom_call.1} parent=15 // pred_fallthru
          _
        // Predicated region
        $region21: #{tpu_custom_call.1} parent=15 // pred_check
          %p239 = pneg %p102
        $region22: #{tpu_custom_call.1} parent=15 // pred_check_branch
          %241 = sbr.rel (%p239) target = $region24
        $region23: #{tpu_custom_call.1} parent=15 // pred_region
          %s242 = sand.u32 %s22, 1
          %s243 = scalar_lea.sflag [#allocation9], %s242
          %s244 = sand.u32 %s92, 1
          %s245 = smul.addr %s244, 128
          %s246 = scalar_lea.vmem [#allocation8], %s245
          %s247 = smul.u32 4, %s30
          %s249 = ssub.s32 2048, 2048
          %250 = vsyncadd %s243, %s249
          %s251 = smul.addr %s247, 4
          %s252 = sadd.s32 %s32, %s251
          %s253 = smul.addr %s29, 16
          %s254 = sadd.s32 %s252, %s253
          %s255 = smul.addr %s254, 128
          %s256 = scalar_lea.hbm %s1, %s255
          %s257 = sshll.u32 %s246, 4
          %s258 = int_to_ptr.vmem [resolvable:$true] %s257
          %263 = dma.hbm_to_vmem [thread:$0]  %s256, 2048, %s258, %s243, 128, 128, 8
        $region24: #{tpu_custom_call.1} parent=15 // pred_fallthru
          _
        // Predicated region
        $region25: #{tpu_custom_call.1} parent=15 // pred_check
          %p264 = pneg %p132
        $region26: #{tpu_custom_call.1} parent=15 // pred_check_branch
          %266 = sbr.rel (%p264) target = $region28
        $region27: #{tpu_custom_call.1} parent=15 // pred_region
          %s267 = sand.u32 %s22, 1
          %s268 = scalar_lea.sflag [#allocation9], %s267
          %s269 = sand.u32 %s122, 1
          %s270 = smul.addr %s269, 32
          %s271 = scalar_lea.vmem [#allocation10], %s270
          %s272 = smul.u32 4, %s30
          %s274 = ssub.s32 512, 512
          %275 = vsyncadd %s268, %s274
          %s276 = sadd.s32 %s32, %s272
          %s277 = smul.addr %s29, 4
          %s278 = sadd.s32 %s276, %s277
          %s279 = smul.addr %s278, 128
          %s280 = scalar_lea.hbm %s2, %s279
          %s281 = sshll.u32 %s271, 4
          %s282 = int_to_ptr.vmem [resolvable:$true] %s281
          %287 = dma.hbm_to_vmem [thread:$0]  %s280, 512, %s282, %s268, 128, 128, 8
        $region28: #{tpu_custom_call.1} parent=15 // pred_fallthru
          _
        // Predicated region
        $region29: #{tpu_custom_call.1} parent=15 // pred_check
          %p288 = pneg %p160
        $region30: #{tpu_custom_call.1} parent=15 // pred_check_branch
          %290 = sbr.rel (%p288) target = $region32
        $region31: #{tpu_custom_call.1} parent=15 // pred_region
          %s291 = sand.u32 %s150, 1
          %s292 = scalar_lea.sflag [#allocation12], %s291
          %s293 = sand.u32 %s150, 1
          %s294 = scalar_lea.vmem [#allocation11], %s293
          %s296 = ssub.s32 16, 16
          %297 = vsyncadd %s292, %s296
          %s298 = sadd.s32 %s32, %s29
          %s299 = smul.addr %s298, 16
          %s300 = scalar_lea.hbm %s3, %s299
          %s302 = sshll.u32 %s294, 4
          %s303 = int_to_ptr.vmem [resolvable:$true] %s302
          %305 = dma.hbm_to_vmem [thread:$0]  %s300, 16, %s303, %s292
        $region32: #{tpu_custom_call.1} parent=15 // pred_fallthru
          _
      $region16: #{tpu_custom_call.1} parent=5 // pred_fallthru
        _
      %p306 = scmp.le.s32.totalorder 1, %s22
      %p307 = scmp.lt.s32.totalorder %s22, 3
      %p308 = pnand %p306, %p307
      %p309 = pneg %p308
      // Predicated region
      $region33: #{tpu_custom_call.1} parent=5 // pred_check
        _
      $region34: #{tpu_custom_call.1} parent=5 // pred_check_branch
        %311 = sbr.rel (%p308) target = $region36
      $region35: #{tpu_custom_call.1} parent=5 // pred_region
        %s312 = ssub.s32 %s22, 1
        %s313 = sand.u32 %s65, 1
        %s314 = scalar_lea.sflag [#allocation6], %s313
        %s315 = sand.u32 %s65, 1
        %s316 = smul.addr %s315, 32
        %s317 = scalar_lea.vmem [#allocation5], %s316
        // Predicated region
        $region37: #{tpu_custom_call.1} parent=35 // pred_check
          %p318 = pneg %p78
        $region38: #{tpu_custom_call.1} parent=35 // pred_check_branch
          %320 = sbr.rel (%p318) target = $region40
        $region39: #{tpu_custom_call.1} parent=35 // pred_region
          %321 = dma.done %s314, 512
        $region40: #{tpu_custom_call.1} parent=35 // pred_fallthru
          _
        %s322 = sand.u32 %s27, 1
        %s323 = scalar_lea.sflag [#allocation9], %s322
        %s324 = sand.u32 %s95, 1
        %s325 = smul.addr %s324, 128
        %s326 = scalar_lea.vmem [#allocation8], %s325
        // Predicated region
        $region41: #{tpu_custom_call.1} parent=35 // pred_check
          %p327 = pneg %p108
        $region42: #{tpu_custom_call.1} parent=35 // pred_check_branch
          %329 = sbr.rel (%p327) target = $region44
        $region43: #{tpu_custom_call.1} parent=35 // pred_region
          %330 = dma.done %s323, 2048
        $region44: #{tpu_custom_call.1} parent=35 // pred_fallthru
          _
        %s331 = sand.u32 %s27, 1
        %s332 = scalar_lea.sflag [#allocation9], %s331
        %s333 = sand.u32 %s125, 1
        %s334 = smul.addr %s333, 32
        %s335 = scalar_lea.vmem [#allocation10], %s334
        // Predicated region
        $region45: #{tpu_custom_call.1} parent=35 // pred_check
          %p336 = pneg %p138
        $region46: #{tpu_custom_call.1} parent=35 // pred_check_branch
          %338 = sbr.rel (%p336) target = $region48
        $region47: #{tpu_custom_call.1} parent=35 // pred_region
          %339 = dma.done %s332, 512
        $region48: #{tpu_custom_call.1} parent=35 // pred_fallthru
          _
        %s340 = sand.u32 %s153, 1
        %s341 = scalar_lea.sflag [#allocation12], %s340
        %s342 = sand.u32 %s153, 1
        %s343 = scalar_lea.vmem [#allocation11], %s342
        // Predicated region
        $region49: #{tpu_custom_call.1} parent=35 // pred_check
          %p344 = pneg %p166
        $region50: #{tpu_custom_call.1} parent=35 // pred_check_branch
          %346 = sbr.rel (%p344) target = $region52
        $region51: #{tpu_custom_call.1} parent=35 // pred_region
          %347 = dma.done %s341, 16
        $region52: #{tpu_custom_call.1} parent=35 // pred_fallthru
          _
        %s348 = sand.u32 %s65, 1
        %s349 = scalar_lea.sflag [#allocation6], %s348
        %s350 = sand.u32 %s65, 1
        %s351 = smul.addr %s350, 32
        %s352 = scalar_lea.vmem [#allocation5], %s351
        %p353 = pneg %p78
        %p354 = pneg %p75
        %s355 = sand.u32 %s27, 1
        %s356 = scalar_lea.sflag [#allocation9], %s355
        %s357 = sand.u32 %s95, 1
        %s358 = smul.addr %s357, 128
        %s359 = scalar_lea.vmem [#allocation8], %s358
        %p360 = pneg %p108
        %p361 = pneg %p105
        %s362 = sand.u32 %s27, 1
        %s363 = scalar_lea.sflag [#allocation9], %s362
        %s364 = sand.u32 %s125, 1
        %s365 = smul.addr %s364, 32
        %s366 = scalar_lea.vmem [#allocation10], %s365
        %p367 = pneg %p138
        %p368 = pneg %p135
        %s369 = sand.u32 %s153, 1
        %s370 = scalar_lea.sflag [#allocation12], %s369
        %s371 = sand.u32 %s153, 1
        %s372 = scalar_lea.vmem [#allocation11], %s371
        %p373 = pneg %p166
        %p374 = pneg %p163
        %p375 = pneg %p196
        %p376 = pneg %p193
        %s377 = sand.u32 %s183, 1
        %s378 = scalar_lea.sflag [#allocation7], %s377
        %s379 = sand.u32 %s183, 1
        %s380 = smul.addr %s379, 32
        %s381 = scalar_lea.vmem [#allocation13], %s380
        %s382 = smul.u32 4, %s34
        %s383 = smul.u32 4, %s34
        %s384 = smul.u32 4, %s34
        %s385 = smul.u32 4, %s34
        %p386 = scmp.eq.s32.totalorder %s36, 0
        // Predicated region
        $region53: #{tpu_custom_call.1} parent=35 // pred_check
          %p387 = pneg %p386
        $region54: #{tpu_custom_call.1} parent=35 // pred_check_branch
          %389 = sbr.rel (%p387) target = $region56
        $region55: #{tpu_custom_call.1} parent=35 // pred_region
          %vm390 = vcmask 7168
          %391 = vst.msk [vmem:[#allocation2] sm:$0xff] %vm390, -1e+30
          %392 = vst.msk [vmem:[#allocation2 + $0x8] sm:$0xff] %vm390, -1e+30
          %393 = vst.msk [vmem:[#allocation2 + $0x10] sm:$0xff] %vm390, -1e+30
          %394 = vst.msk [vmem:[#allocation2 + $0x18] sm:$0xff] %vm390, -1e+30
          %395 = vst.msk [vmem:[#allocation3] sm:$0xff] %vm390, 0.0
          %396 = vst.msk [vmem:[#allocation3 + $0x8] sm:$0xff] %vm390, 0.0
          %397 = vst.msk [vmem:[#allocation3 + $0x10] sm:$0xff] %vm390, 0.0
          %398 = vst.msk [vmem:[#allocation3 + $0x18] sm:$0xff] %vm390, 0.0
          %vm399 = vcmask 261120
          %400 = vst.msk [vmem:[#allocation4] sm:$0xff] %vm399, 0.0
          %401 = vst.msk [vmem:[#allocation4 + $0x8] sm:$0xff] %vm399, 0.0
          %402 = vst.msk [vmem:[#allocation4 + $0x10] sm:$0xff] %vm399, 0.0
          %403 = vst.msk [vmem:[#allocation4 + $0x18] sm:$0xff] %vm399, 0.0
        $region56: #{tpu_custom_call.1} parent=35 // pred_fallthru
          _
        %v404 = vld [vmem:[%s343] sm:$0x1]
        %v405 = vld [vmem:[%s317] sm:$0xff]
        %v406 = vmul.f32 %v405, 0.125
        %v407 = vld [vmem:[%s326] sm:$0xff]
        %v408 = vld [vmem:[%s326 + $0x8] sm:$0xff]
        %v409 = vld [vmem:[%s326 + $0x10] sm:$0xff]
        %v410 = vld [vmem:[%s326 + $0x18] sm:$0xff]
        %v411 = vld [vmem:[%s335] sm:$0xff]
        %v413 = vlaneseq
        %v414 = vshrl.u32 %v413, 7
        %v415 = vsub.s32 0, %v414
        %v416 = vrot.slane %v404, %v415
        %vm418 = vcmask 261120
        %v420 = vsel %vm418, %v406, 0
        %422 = vmatprep.subr.mxu0 0.0
        %423 = vmatpush1.msra.mxu0 %v407
        %424 = vmatprep.subr.mxu0 0.0
        %425 = vmatpush1.msra.mxu0 %v408
        %426 = vmatprep.subr.mxu0 0.0
        %427 = vmatpush1.msra.mxu0 %v409
        %428 = vmatprep.subr.mxu0 0.0
        %429 = vmatpush1.msra.mxu0 %v410
        %430 = vmatprep.subr.mxu0 0.0
        %431 = vmatpush1.msra.mxu0 0.0
        %432 = vmatprep.subr.mxu0 0.0
        %433 = vmatpush1.msra.mxu0 0.0
        %434 = vmatprep.subr.mxu0 0.0
        %435 = vmatpush1.msra.mxu0 0.0
        %436 = vmatprep.subr.mxu0 0.0
        %437 = vmatpush1.msra.mxu0 0.0
        %438 = vmatprep.subr.mxu0 0.0
        %439 = vmatpush1.msra.mxu0 0.0
        %440 = vmatprep.subr.mxu0 0.0
        %441 = vmatpush1.msra.mxu0 0.0
        %442 = vmatprep.subr.mxu0 0.0
        %443 = vmatpush1.msra.mxu0 0.0
        %444 = vmatprep.subr.mxu0 0.0
        %445 = vmatpush1.msra.mxu0 0.0
        %446 = vmatprep.subr.mxu0 0.0
        %447 = vmatpush1.msra.mxu0 0.0
        %448 = vmatprep.subr.mxu0 0.0
        %449 = vmatpush1.msra.mxu0 0.0
        %450 = vmatprep.subr.mxu0 0.0
        %451 = vmatpush1.msra.mxu0 0.0
        %452 = vmatprep.subr.mxu0 0.0
        %453 = vmatpush1.msra.mxu0 0.0
        %454 = vmatprep.subr.mxu0 0.0
        %455 = vmatpush1.msra.mxu0 0.0
        %456 = vmatprep.subr.mxu0 0.0
        %457 = vmatpush1.msra.mxu0 0.0
        %458 = vmatprep.subr.mxu0 0.0
        %459 = vmatpush1.msra.mxu0 0.0
        %460 = vmatprep.subr.mxu0 0.0
        %461 = vmatpush1.msra.mxu0 0.0
        %462 = vmatprep.subr.mxu0 0.0
        %463 = vmatpush1.msra.mxu0 0.0
        %464 = vmatprep.subr.mxu0 0.0
        %465 = vmatpush1.msra.mxu0 0.0
        %466 = vmatprep.subr.mxu0 0.0
        %467 = vmatpush1.msra.mxu0 0.0
        %468 = vmatprep.subr.mxu0 0.0
        %469 = vmatpush1.msra.mxu0 0.0
        %470 = vmatprep.subr.mxu0 0.0
        %471 = vmatpush1.msra.mxu0 0.0
        %472 = vmatprep.subr.mxu0 0.0
        %473 = vmatpush1.msra.mxu0 0.0
        %474 = vmatprep.subr.mxu0 0.0
        %475 = vmatpush1.msra.mxu0 0.0
        %476 = vmatprep.subr.mxu0 0.0
        %477 = vmatpush1.msra.mxu0 0.0
        %478 = vmatprep.subr.mxu0 0.0
        %479 = vmatpush1.msra.mxu0 0.0
        %480 = vmatprep.subr.mxu0 0.0
        %481 = vmatpush1.msra.mxu0 0.0
        %482 = vmatprep.subr.mxu0 0.0
        %483 = vmatpush1.msra.mxu0 0.0
        %484 = vmatprep.subr.mxu0 0.0
        %485 = vmatpush1.msra.mxu0 0.0
        %486 = vmatprep.mubr.f32.mxu0 0.0
        %487 = vmatmul.mubr.f32.gmra.mrb[0].mxu0 %v420
        %v488 = vpop.f32.mrb[0].mxu0
        %v489 = vadd.f32 %v416, %v488
        %v490 = vpop.f32.mrb[0].mxu0
        %491 = vdwg.mxu0
        %v492 = vld [vmem:[#allocation2] sm:$0xff]
        %vm493 = vcmask 64512
        %v494 = vsel %vm493, %v489, -inf
        %495 = vmax.xlane.f32.xlu0 %v494
        %v496 = vpop.xlane.xlu0 %495
        %v497 = vmax.f32 %v492, %v496
        %v498 = vsub.f32 %v492, %v497
        %v499 = vmul.f32 %v498, 1.442695
        %v500 = vpow.pop %v499
        %502 = vset.pattern.permute.xlu0 0
        %503 = vperm.xlu0 %502, %v497
        %v504 = vpop.permute.xlu0 %503
        %v506 = vsub.f32 %v489, %v504
        %v507 = vmul.f32 %v506, 1.442695
        %v508 = vpow.pop %v507
        %v509 = vld [vmem:[#allocation3] sm:$0xff]
        %v510 = vmul.f32 %v500, %v509
        %v511 = vsel %vm493, %v508, 0.0
        %512 = vadd.xlane.f32.xlu0 %v511
        %v513 = vpop.xlane.xlu0 %512
        %v514 = vadd.f32 %v510, %v513
        %vm515 = vcmask 7168
        %516 = vst.msk [vmem:[#allocation3] sm:$0xff] %vm515, %v514
        %v517 = vld [vmem:[#allocation4] sm:$0xff]
        %519 = vset.pattern.permute.xlu0 0
        %520 = vperm.xlu0 %519, %v500
        %v521 = vpop.permute.xlu0 %520
        %v523 = vmul.f32 %v521, %v517
        %v525 = vsel %vm493, %v508, 0
        %527 = vmatprep.subr.mxu0 0.0
        %528 = vmatpush1.msra.mxu0 %v411
        %529 = vmatprep.subr.mxu0 0.0
        %530 = vmatpush1.msra.mxu0 0.0
        %531 = vmatprep.subr.mxu0 0.0
        %532 = vmatpush1.msra.mxu0 0.0
        %533 = vmatprep.subr.mxu0 0.0
        %534 = vmatpush1.msra.mxu0 0.0
        %535 = vmatprep.subr.mxu0 0.0
        %536 = vmatpush1.msra.mxu0 0.0
        %537 = vmatprep.subr.mxu0 0.0
        %538 = vmatpush1.msra.mxu0 0.0
        %539 = vmatprep.subr.mxu0 0.0
        %540 = vmatpush1.msra.mxu0 0.0
        %541 = vmatprep.subr.mxu0 0.0
        %542 = vmatpush1.msra.mxu0 0.0
        %543 = vmatprep.subr.mxu0 0.0
        %544 = vmatpush1.msra.mxu0 0.0
        %545 = vmatprep.subr.mxu0 0.0
        %546 = vmatpush1.msra.mxu0 0.0
        %547 = vmatprep.subr.mxu0 0.0
        %548 = vmatpush1.msra.mxu0 0.0
        %549 = vmatprep.subr.mxu0 0.0
        %550 = vmatpush1.msra.mxu0 0.0
        %551 = vmatprep.subr.mxu0 0.0
        %552 = vmatpush1.msra.mxu0 0.0
        %553 = vmatprep.subr.mxu0 0.0
        %554 = vmatpush1.msra.mxu0 0.0
        %555 = vmatprep.subr.mxu0 0.0
        %556 = vmatpush1.msra.mxu0 0.0
        %557 = vmatprep.subr.mxu0 0.0
        %558 = vmatpush1.msra.mxu0 0.0
        %559 = vmatprep.subr.mxu0 0.0
        %560 = vmatpush1.msra.mxu0 0.0
        %561 = vmatprep.subr.mxu0 0.0
        %562 = vmatpush1.msra.mxu0 0.0
        %563 = vmatprep.subr.mxu0 0.0
        %564 = vmatpush1.msra.mxu0 0.0
        %565 = vmatprep.subr.mxu0 0.0
        %566 = vmatpush1.msra.mxu0 0.0
        %567 = vmatprep.subr.mxu0 0.0
        %568 = vmatpush1.msra.mxu0 0.0
        %569 = vmatprep.subr.mxu0 0.0
        %570 = vmatpush1.msra.mxu0 0.0
        %571 = vmatprep.subr.mxu0 0.0
        %572 = vmatpush1.msra.mxu0 0.0
        %573 = vmatprep.subr.mxu0 0.0
        %574 = vmatpush1.msra.mxu0 0.0
        %575 = vmatprep.subr.mxu0 0.0
        %576 = vmatpush1.msra.mxu0 0.0
        %577 = vmatprep.subr.mxu0 0.0
        %578 = vmatpush1.msra.mxu0 0.0
        %579 = vmatprep.subr.mxu0 0.0
        %580 = vmatpush1.msra.mxu0 0.0
        %581 = vmatprep.subr.mxu0 0.0
        %582 = vmatpush1.msra.mxu0 0.0
        %583 = vmatprep.subr.mxu0 0.0
        %584 = vmatpush1.msra.mxu0 0.0
        %585 = vmatprep.subr.mxu0 0.0
        %586 = vmatpush1.msra.mxu0 0.0
        %587 = vmatprep.subr.mxu0 0.0
        %588 = vmatpush1.msra.mxu0 0.0
        %589 = vmatprep.subr.mxu0 0.0
        %590 = vmatpush1.msra.mxu0 0.0
        %591 = vmatprep.mubr.f32.mxu0 0.0
        %592 = vmatmul.mubr.f32.gmra.mrb[0].mxu0 %v525
        %v593 = vpop.f32.mrb[0].mxu0
        %v594 = vadd.f32 0.0, %v593
        %v595 = vpop.f32.mrb[0].mxu0
        %596 = vdwg.mxu0
        %v597 = vadd.f32 %v523, %v594
        %598 = vst.msk [vmem:[#allocation4] sm:$0xff] %vm418, %v597
        %599 = vst.msk [vmem:[#allocation2] sm:$0xff] %vm515, %v497
        %s600 = scalar_lea.vmem %s317, 8 [#allocation5]
        %v601 = vld [vmem:[%s600] sm:$0xff]
        %v602 = vmul.f32 %v601, 0.125
        %s603 = scalar_lea.vmem %s326, 32 [#allocation8]
        %v604 = vld [vmem:[%s603] sm:$0xff]
        %v605 = vld [vmem:[%s603 + $0x8] sm:$0xff]
        %v606 = vld [vmem:[%s603 + $0x10] sm:$0xff]
        %v607 = vld [vmem:[%s603 + $0x18] sm:$0xff]
        %s608 = scalar_lea.vmem %s335, 8 [#allocation10]
        %v609 = vld [vmem:[%s608] sm:$0xff]
        %v611 = vsel %vm418, %v602, 0
        %613 = vmatprep.subr.mxu0 0.0
        %614 = vmatpush1.msra.mxu0 %v604
        %615 = vmatprep.subr.mxu0 0.0
        %616 = vmatpush1.msra.mxu0 %v605
        %617 = vmatprep.subr.mxu0 0.0
        %618 = vmatpush1.msra.mxu0 %v606
        %619 = vmatprep.subr.mxu0 0.0
        %620 = vmatpush1.msra.mxu0 %v607
        %621 = vmatprep.subr.mxu0 0.0
        %622 = vmatpush1.msra.mxu0 0.0
        %623 = vmatprep.subr.mxu0 0.0
        %624 = vmatpush1.msra.mxu0 0.0
        %625 = vmatprep.subr.mxu0 0.0
        %626 = vmatpush1.msra.mxu0 0.0
        %627 = vmatprep.subr.mxu0 0.0
        %628 = vmatpush1.msra.mxu0 0.0
        %629 = vmatprep.subr.mxu0 0.0
        %630 = vmatpush1.msra.mxu0 0.0
        %631 = vmatprep.subr.mxu0 0.0
        %632 = vmatpush1.msra.mxu0 0.0
        %633 = vmatprep.subr.mxu0 0.0
        %634 = vmatpush1.msra.mxu0 0.0
        %635 = vmatprep.subr.mxu0 0.0
        %636 = vmatpush1.msra.mxu0 0.0
        %637 = vmatprep.subr.mxu0 0.0
        %638 = vmatpush1.msra.mxu0 0.0
        %639 = vmatprep.subr.mxu0 0.0
        %640 = vmatpush1.msra.mxu0 0.0
        %641 = vmatprep.subr.mxu0 0.0
        %642 = vmatpush1.msra.mxu0 0.0
        %643 = vmatprep.subr.mxu0 0.0
        %644 = vmatpush1.msra.mxu0 0.0
        %645 = vmatprep.subr.mxu0 0.0
        %646 = vmatpush1.msra.mxu0 0.0
        %647 = vmatprep.subr.mxu0 0.0
        %648 = vmatpush1.msra.mxu0 0.0
        %649 = vmatprep.subr.mxu0 0.0
        %650 = vmatpush1.msra.mxu0 0.0
        %651 = vmatprep.subr.mxu0 0.0
        %652 = vmatpush1.msra.mxu0 0.0
        %653 = vmatprep.subr.mxu0 0.0
        %654 = vmatpush1.msra.mxu0 0.0
        %655 = vmatprep.subr.mxu0 0.0
        %656 = vmatpush1.msra.mxu0 0.0
        %657 = vmatprep.subr.mxu0 0.0
        %658 = vmatpush1.msra.mxu0 0.0
        %659 = vmatprep.subr.mxu0 0.0
        %660 = vmatpush1.msra.mxu0 0.0
        %661 = vmatprep.subr.mxu0 0.0
        %662 = vmatpush1.msra.mxu0 0.0
        %663 = vmatprep.subr.mxu0 0.0
        %664 = vmatpush1.msra.mxu0 0.0
        %665 = vmatprep.subr.mxu0 0.0
        %666 = vmatpush1.msra.mxu0 0.0
        %667 = vmatprep.subr.mxu0 0.0
        %668 = vmatpush1.msra.mxu0 0.0
        %669 = vmatprep.subr.mxu0 0.0
        %670 = vmatpush1.msra.mxu0 0.0
        %671 = vmatprep.subr.mxu0 0.0
        %672 = vmatpush1.msra.mxu0 0.0
        %673 = vmatprep.subr.mxu0 0.0
        %674 = vmatpush1.msra.mxu0 0.0
        %675 = vmatprep.subr.mxu0 0.0
        %676 = vmatpush1.msra.mxu0 0.0
        %677 = vmatprep.mubr.f32.mxu0 0.0
        %678 = vmatmul.mubr.f32.gmra.mrb[0].mxu0 %v611
        %v679 = vpop.f32.mrb[0].mxu0
        %v680 = vadd.f32 %v416, %v679
        %v681 = vpop.f32.mrb[0].mxu0
        %682 = vdwg.mxu0
        %s683 = scalar_lea.vmem [#allocation2], 8
        %v684 = vld [vmem:[%s683] sm:$0xff]
        %v685 = vsel %vm493, %v680, -inf
        %686 = vmax.xlane.f32.xlu0 %v685
        %v687 = vpop.xlane.xlu0 %686
        %v688 = vmax.f32 %v684, %v687
        %v689 = vsub.f32 %v684, %v688
        %v690 = vmul.f32 %v689, 1.442695
        %v691 = vpow.pop %v690
        %693 = vset.pattern.permute.xlu0 0
        %694 = vperm.xlu0 %693, %v688
        %v695 = vpop.permute.xlu0 %694
        %v697 = vsub.f32 %v680, %v695
        %v698 = vmul.f32 %v697, 1.442695
        %v699 = vpow.pop %v698
        %s700 = scalar_lea.vmem [#allocation3], 8
        %v701 = vld [vmem:[%s700] sm:$0xff]
        %v702 = vmul.f32 %v691, %v701
        %v703 = vsel %vm493, %v699, 0.0
        %704 = vadd.xlane.f32.xlu0 %v703
        %v705 = vpop.xlane.xlu0 %704
        %v706 = vadd.f32 %v702, %v705
        %707 = vst.msk [vmem:[%s700] sm:$0xff] %vm515, %v706
        %s708 = scalar_lea.vmem [#allocation4], 8
        %v709 = vld [vmem:[%s708] sm:$0xff]
        %711 = vset.pattern.permute.xlu0 0
        %712 = vperm.xlu0 %711, %v691
        %v713 = vpop.permute.xlu0 %712
        %v715 = vmul.f32 %v713, %v709
        %v717 = vsel %vm493, %v699, 0
        %719 = vmatprep.subr.mxu0 0.0
        %720 = vmatpush1.msra.mxu0 %v609
        %721 = vmatprep.subr.mxu0 0.0
        %722 = vmatpush1.msra.mxu0 0.0
        %723 = vmatprep.subr.mxu0 0.0
        %724 = vmatpush1.msra.mxu0 0.0
        %725 = vmatprep.subr.mxu0 0.0
        %726 = vmatpush1.msra.mxu0 0.0
        %727 = vmatprep.subr.mxu0 0.0
        %728 = vmatpush1.msra.mxu0 0.0
        %729 = vmatprep.subr.mxu0 0.0
        %730 = vmatpush1.msra.mxu0 0.0
        %731 = vmatprep.subr.mxu0 0.0
        %732 = vmatpush1.msra.mxu0 0.0
        %733 = vmatprep.subr.mxu0 0.0
        %734 = vmatpush1.msra.mxu0 0.0
        %735 = vmatprep.subr.mxu0 0.0
        %736 = vmatpush1.msra.mxu0 0.0
        %737 = vmatprep.subr.mxu0 0.0
        %738 = vmatpush1.msra.mxu0 0.0
        %739 = vmatprep.subr.mxu0 0.0
        %740 = vmatpush1.msra.mxu0 0.0
        %741 = vmatprep.subr.mxu0 0.0
        %742 = vmatpush1.msra.mxu0 0.0
        %743 = vmatprep.subr.mxu0 0.0
        %744 = vmatpush1.msra.mxu0 0.0
        %745 = vmatprep.subr.mxu0 0.0
        %746 = vmatpush1.msra.mxu0 0.0
        %747 = vmatprep.subr.mxu0 0.0
        %748 = vmatpush1.msra.mxu0 0.0
        %749 = vmatprep.subr.mxu0 0.0
        %750 = vmatpush1.msra.mxu0 0.0
        %751 = vmatprep.subr.mxu0 0.0
        %752 = vmatpush1.msra.mxu0 0.0
        %753 = vmatprep.subr.mxu0 0.0
        %754 = vmatpush1.msra.mxu0 0.0
        %755 = vmatprep.subr.mxu0 0.0
        %756 = vmatpush1.msra.mxu0 0.0
        %757 = vmatprep.subr.mxu0 0.0
        %758 = vmatpush1.msra.mxu0 0.0
        %759 = vmatprep.subr.mxu0 0.0
        %760 = vmatpush1.msra.mxu0 0.0
        %761 = vmatprep.subr.mxu0 0.0
        %762 = vmatpush1.msra.mxu0 0.0
        %763 = vmatprep.subr.mxu0 0.0
        %764 = vmatpush1.msra.mxu0 0.0
        %765 = vmatprep.subr.mxu0 0.0
        %766 = vmatpush1.msra.mxu0 0.0
        %767 = vmatprep.subr.mxu0 0.0
        %768 = vmatpush1.msra.mxu0 0.0
        %769 = vmatprep.subr.mxu0 0.0
        %770 = vmatpush1.msra.mxu0 0.0
        %771 = vmatprep.subr.mxu0 0.0
        %772 = vmatpush1.msra.mxu0 0.0
        %773 = vmatprep.subr.mxu0 0.0
        %774 = vmatpush1.msra.mxu0 0.0
        %775 = vmatprep.subr.mxu0 0.0
        %776 = vmatpush1.msra.mxu0 0.0
        %777 = vmatprep.subr.mxu0 0.0
        %778 = vmatpush1.msra.mxu0 0.0
        %779 = vmatprep.subr.mxu0 0.0
        %780 = vmatpush1.msra.mxu0 0.0
        %781 = vmatprep.subr.mxu0 0.0
        %782 = vmatpush1.msra.mxu0 0.0
        %783 = vmatprep.mubr.f32.mxu0 0.0
        %784 = vmatmul.mubr.f32.gmra.mrb[0].mxu0 %v717
        %v785 = vpop.f32.mrb[0].mxu0
        %v786 = vadd.f32 0.0, %v785
        %v787 = vpop.f32.mrb[0].mxu0
        %788 = vdwg.mxu0
        %v789 = vadd.f32 %v715, %v786
        %790 = vst.msk [vmem:[%s708] sm:$0xff] %vm418, %v789
        %791 = vst.msk [vmem:[%s683] sm:$0xff] %vm515, %v688
        %s792 = scalar_lea.vmem %s317, 16 [#allocation5]
        %v793 = vld [vmem:[%s792] sm:$0xff]
        %v794 = vmul.f32 %v793, 0.125
        %s795 = scalar_lea.vmem %s326, 64 [#allocation8]
        %v796 = vld [vmem:[%s795] sm:$0xff]
        %v797 = vld [vmem:[%s795 + $0x8] sm:$0xff]
        %v798 = vld [vmem:[%s795 + $0x10] sm:$0xff]
        %v799 = vld [vmem:[%s795 + $0x18] sm:$0xff]
        %s800 = scalar_lea.vmem %s335, 16 [#allocation10]
        %v801 = vld [vmem:[%s800] sm:$0xff]
        %v803 = vsel %vm418, %v794, 0
        %805 = vmatprep.subr.mxu0 0.0
        %806 = vmatpush1.msra.mxu0 %v796
        %807 = vmatprep.subr.mxu0 0.0
        %808 = vmatpush1.msra.mxu0 %v797
        %809 = vmatprep.subr.mxu0 0.0
        %810 = vmatpush1.msra.mxu0 %v798
        %811 = vmatprep.subr.mxu0 0.0
        %812 = vmatpush1.msra.mxu0 %v799
        %813 = vmatprep.subr.mxu0 0.0
        %814 = vmatpush1.msra.mxu0 0.0
        %815 = vmatprep.subr.mxu0 0.0
        %816 = vmatpush1.msra.mxu0 0.0
        %817 = vmatprep.subr.mxu0 0.0
        %818 = vmatpush1.msra.mxu0 0.0
        %819 = vmatprep.subr.mxu0 0.0
        %820 = vmatpush1.msra.mxu0 0.0
        %821 = vmatprep.subr.mxu0 0.0
        %822 = vmatpush1.msra.mxu0 0.0
        %823 = vmatprep.subr.mxu0 0.0
        %824 = vmatpush1.msra.mxu0 0.0
        %825 = vmatprep.subr.mxu0 0.0
        %826 = vmatpush1.msra.mxu0 0.0
        %827 = vmatprep.subr.mxu0 0.0
        %828 = vmatpush1.msra.mxu0 0.0
        %829 = vmatprep.subr.mxu0 0.0
        %830 = vmatpush1.msra.mxu0 0.0
        %831 = vmatprep.subr.mxu0 0.0
        %832 = vmatpush1.msra.mxu0 0.0
        %833 = vmatprep.subr.mxu0 0.0
        %834 = vmatpush1.msra.mxu0 0.0
        %835 = vmatprep.subr.mxu0 0.0
        %836 = vmatpush1.msra.mxu0 0.0
        %837 = vmatprep.subr.mxu0 0.0
        %838 = vmatpush1.msra.mxu0 0.0
        %839 = vmatprep.subr.mxu0 0.0
        %840 = vmatpush1.msra.mxu0 0.0
        %841 = vmatprep.subr.mxu0 0.0
        %842 = vmatpush1.msra.mxu0 0.0
        %843 = vmatprep.subr.mxu0 0.0
        %844 = vmatpush1.msra.mxu0 0.0
        %845 = vmatprep.subr.mxu0 0.0
        %846 = vmatpush1.msra.mxu0 0.0
        %847 = vmatprep.subr.mxu0 0.0
        %848 = vmatpush1.msra.mxu0 0.0
        %849 = vmatprep.subr.mxu0 0.0
        %850 = vmatpush1.msra.mxu0 0.0
        %851 = vmatprep.subr.mxu0 0.0
        %852 = vmatpush1.msra.mxu0 0.0
        %853 = vmatprep.subr.mxu0 0.0
        %854 = vmatpush1.msra.mxu0 0.0
        %855 = vmatprep.subr.mxu0 0.0
        %856 = vmatpush1.msra.mxu0 0.0
        %857 = vmatprep.subr.mxu0 0.0
        %858 = vmatpush1.msra.mxu0 0.0
        %859 = vmatprep.subr.mxu0 0.0
        %860 = vmatpush1.msra.mxu0 0.0
        %861 = vmatprep.subr.mxu0 0.0
        %862 = vmatpush1.msra.mxu0 0.0
        %863 = vmatprep.subr.mxu0 0.0
        %864 = vmatpush1.msra.mxu0 0.0
        %865 = vmatprep.subr.mxu0 0.0
        %866 = vmatpush1.msra.mxu0 0.0
        %867 = vmatprep.subr.mxu0 0.0
        %868 = vmatpush1.msra.mxu0 0.0
        %869 = vmatprep.mubr.f32.mxu0 0.0
        %870 = vmatmul.mubr.f32.gmra.mrb[0].mxu0 %v803
        %v871 = vpop.f32.mrb[0].mxu0
        %v872 = vadd.f32 %v416, %v871
        %v873 = vpop.f32.mrb[0].mxu0
        %874 = vdwg.mxu0
        %s875 = scalar_lea.vmem [#allocation2], 16
        %v876 = vld [vmem:[%s875] sm:$0xff]
        %v877 = vsel %vm493, %v872, -inf
        %878 = vmax.xlane.f32.xlu0 %v877
        %v879 = vpop.xlane.xlu0 %878
        %v880 = vmax.f32 %v876, %v879
        %v881 = vsub.f32 %v876, %v880
        %v882 = vmul.f32 %v881, 1.442695
        %v883 = vpow.pop %v882
        %885 = vset.pattern.permute.xlu0 0
        %886 = vperm.xlu0 %885, %v880
        %v887 = vpop.permute.xlu0 %886
        %v889 = vsub.f32 %v872, %v887
        %v890 = vmul.f32 %v889, 1.442695
        %v891 = vpow.pop %v890
        %s892 = scalar_lea.vmem [#allocation3], 16
        %v893 = vld [vmem:[%s892] sm:$0xff]
        %v894 = vmul.f32 %v883, %v893
        %v895 = vsel %vm493, %v891, 0.0
        %896 = vadd.xlane.f32.xlu0 %v895
        %v897 = vpop.xlane.xlu0 %896
        %v898 = vadd.f32 %v894, %v897
        %899 = vst.msk [vmem:[%s892] sm:$0xff] %vm515, %v898
        %s900 = scalar_lea.vmem [#allocation4], 16
        %v901 = vld [vmem:[%s900] sm:$0xff]
        %903 = vset.pattern.permute.xlu0 0
        %904 = vperm.xlu0 %903, %v883
        %v905 = vpop.permute.xlu0 %904
        %v907 = vmul.f32 %v905, %v901
        %v909 = vsel %vm493, %v891, 0
        %911 = vmatprep.subr.mxu0 0.0
        %912 = vmatpush1.msra.mxu0 %v801
        %913 = vmatprep.subr.mxu0 0.0
        %914 = vmatpush1.msra.mxu0 0.0
        %915 = vmatprep.subr.mxu0 0.0
        %916 = vmatpush1.msra.mxu0 0.0
        %917 = vmatprep.subr.mxu0 0.0
        %918 = vmatpush1.msra.mxu0 0.0
        %919 = vmatprep.subr.mxu0 0.0
        %920 = vmatpush1.msra.mxu0 0.0
        %921 = vmatprep.subr.mxu0 0.0
        %922 = vmatpush1.msra.mxu0 0.0
        %923 = vmatprep.subr.mxu0 0.0
        %924 = vmatpush1.msra.mxu0 0.0
        %925 = vmatprep.subr.mxu0 0.0
        %926 = vmatpush1.msra.mxu0 0.0
        %927 = vmatprep.subr.mxu0 0.0
        %928 = vmatpush1.msra.mxu0 0.0
        %929 = vmatprep.subr.mxu0 0.0
        %930 = vmatpush1.msra.mxu0 0.0
        %931 = vmatprep.subr.mxu0 0.0
        %932 = vmatpush1.msra.mxu0 0.0
        %933 = vmatprep.subr.mxu0 0.0
        %934 = vmatpush1.msra.mxu0 0.0
        %935 = vmatprep.subr.mxu0 0.0
        %936 = vmatpush1.msra.mxu0 0.0
        %937 = vmatprep.subr.mxu0 0.0
        %938 = vmatpush1.msra.mxu0 0.0
        %939 = vmatprep.subr.mxu0 0.0
        %940 = vmatpush1.msra.mxu0 0.0
        %941 = vmatprep.subr.mxu0 0.0
        %942 = vmatpush1.msra.mxu0 0.0
        %943 = vmatprep.subr.mxu0 0.0
        %944 = vmatpush1.msra.mxu0 0.0
        %945 = vmatprep.subr.mxu0 0.0
        %946 = vmatpush1.msra.mxu0 0.0
        %947 = vmatprep.subr.mxu0 0.0
        %948 = vmatpush1.msra.mxu0 0.0
        %949 = vmatprep.subr.mxu0 0.0
        %950 = vmatpush1.msra.mxu0 0.0
        %951 = vmatprep.subr.mxu0 0.0
        %952 = vmatpush1.msra.mxu0 0.0
        %953 = vmatprep.subr.mxu0 0.0
        %954 = vmatpush1.msra.mxu0 0.0
        %955 = vmatprep.subr.mxu0 0.0
        %956 = vmatpush1.msra.mxu0 0.0
        %957 = vmatprep.subr.mxu0 0.0
        %958 = vmatpush1.msra.mxu0 0.0
        %959 = vmatprep.subr.mxu0 0.0
        %960 = vmatpush1.msra.mxu0 0.0
        %961 = vmatprep.subr.mxu0 0.0
        %962 = vmatpush1.msra.mxu0 0.0
        %963 = vmatprep.subr.mxu0 0.0
        %964 = vmatpush1.msra.mxu0 0.0
        %965 = vmatprep.subr.mxu0 0.0
        %966 = vmatpush1.msra.mxu0 0.0
        %967 = vmatprep.subr.mxu0 0.0
        %968 = vmatpush1.msra.mxu0 0.0
        %969 = vmatprep.subr.mxu0 0.0
        %970 = vmatpush1.msra.mxu0 0.0
        %971 = vmatprep.subr.mxu0 0.0
        %972 = vmatpush1.msra.mxu0 0.0
        %973 = vmatprep.subr.mxu0 0.0
        %974 = vmatpush1.msra.mxu0 0.0
        %975 = vmatprep.mubr.f32.mxu0 0.0
        %976 = vmatmul.mubr.f32.gmra.mrb[0].mxu0 %v909
        %v977 = vpop.f32.mrb[0].mxu0
        %v978 = vadd.f32 0.0, %v977
        %v979 = vpop.f32.mrb[0].mxu0
        %980 = vdwg.mxu0
        %v981 = vadd.f32 %v907, %v978
        %982 = vst.msk [vmem:[%s900] sm:$0xff] %vm418, %v981
        %983 = vst.msk [vmem:[%s875] sm:$0xff] %vm515, %v880
        %s984 = scalar_lea.vmem %s317, 24 [#allocation5]
        %v985 = vld [vmem:[%s984] sm:$0xff]
        %v986 = vmul.f32 %v985, 0.125
        %s987 = scalar_lea.vmem %s326, 96 [#allocation8]
        %v988 = vld [vmem:[%s987] sm:$0xff]
        %v989 = vld [vmem:[%s987 + $0x8] sm:$0xff]
        %v990 = vld [vmem:[%s987 + $0x10] sm:$0xff]
        %v991 = vld [vmem:[%s987 + $0x18] sm:$0xff]
        %s992 = scalar_lea.vmem %s335, 24 [#allocation10]
        %v993 = vld [vmem:[%s992] sm:$0xff]
        %v995 = vsel %vm418, %v986, 0
        %997 = vmatprep.subr.mxu0 0.0
        %998 = vmatpush1.msra.mxu0 %v988
        %999 = vmatprep.subr.mxu0 0.0
        %1000 = vmatpush1.msra.mxu0 %v989
        %1001 = vmatprep.subr.mxu0 0.0
        %1002 = vmatpush1.msra.mxu0 %v990
        %1003 = vmatprep.subr.mxu0 0.0
        %1004 = vmatpush1.msra.mxu0 %v991
        %1005 = vmatprep.subr.mxu0 0.0
        %1006 = vmatpush1.msra.mxu0 0.0
        %1007 = vmatprep.subr.mxu0 0.0
        %1008 = vmatpush1.msra.mxu0 0.0
        %1009 = vmatprep.subr.mxu0 0.0
        %1010 = vmatpush1.msra.mxu0 0.0
        %1011 = vmatprep.subr.mxu0 0.0
        %1012 = vmatpush1.msra.mxu0 0.0
        %1013 = vmatprep.subr.mxu0 0.0
        %1014 = vmatpush1.msra.mxu0 0.0
        %1015 = vmatprep.subr.mxu0 0.0
        %1016 = vmatpush1.msra.mxu0 0.0
        %1017 = vmatprep.subr.mxu0 0.0
        %1018 = vmatpush1.msra.mxu0 0.0
        %1019 = vmatprep.subr.mxu0 0.0
        %1020 = vmatpush1.msra.mxu0 0.0
        %1021 = vmatprep.subr.mxu0 0.0
        %1022 = vmatpush1.msra.mxu0 0.0
        %1023 = vmatprep.subr.mxu0 0.0
        %1024 = vmatpush1.msra.mxu0 0.0
        %1025 = vmatprep.subr.mxu0 0.0
        %1026 = vmatpush1.msra.mxu0 0.0
        %1027 = vmatprep.subr.mxu0 0.0
        %1028 = vmatpush1.msra.mxu0 0.0
        %1029 = vmatprep.subr.mxu0 0.0
        %1030 = vmatpush1.msra.mxu0 0.0
        %1031 = vmatprep.subr.mxu0 0.0
        %1032 = vmatpush1.msra.mxu0 0.0
        %1033 = vmatprep.subr.mxu0 0.0
        %1034 = vmatpush1.msra.mxu0 0.0
        %1035 = vmatprep.subr.mxu0 0.0
        %1036 = vmatpush1.msra.mxu0 0.0
        %1037 = vmatprep.subr.mxu0 0.0
        %1038 = vmatpush1.msra.mxu0 0.0
        %1039 = vmatprep.subr.mxu0 0.0
        %1040 = vmatpush1.msra.mxu0 0.0
        %1041 = vmatprep.subr.mxu0 0.0
        %1042 = vmatpush1.msra.mxu0 0.0
        %1043 = vmatprep.subr.mxu0 0.0
        %1044 = vmatpush1.msra.mxu0 0.0
        %1045 = vmatprep.subr.mxu0 0.0
        %1046 = vmatpush1.msra.mxu0 0.0
        %1047 = vmatprep.subr.mxu0 0.0
        %1048 = vmatpush1.msra.mxu0 0.0
        %1049 = vmatprep.subr.mxu0 0.0
        %1050 = vmatpush1.msra.mxu0 0.0
        %1051 = vmatprep.subr.mxu0 0.0
        %1052 = vmatpush1.msra.mxu0 0.0
        %1053 = vmatprep.subr.mxu0 0.0
        %1054 = vmatpush1.msra.mxu0 0.0
        %1055 = vmatprep.subr.mxu0 0.0
        %1056 = vmatpush1.msra.mxu0 0.0
        %1057 = vmatprep.subr.mxu0 0.0
        %1058 = vmatpush1.msra.mxu0 0.0
        %1059 = vmatprep.subr.mxu0 0.0
        %1060 = vmatpush1.msra.mxu0 0.0
        %1061 = vmatprep.mubr.f32.mxu0 0.0
        %1062 = vmatmul.mubr.f32.gmra.mrb[0].mxu0 %v995
        %v1063 = vpop.f32.mrb[0].mxu0
        %v1064 = vadd.f32 %v416, %v1063
        %v1065 = vpop.f32.mrb[0].mxu0
        %1066 = vdwg.mxu0
        %s1067 = scalar_lea.vmem [#allocation2], 24
        %v1068 = vld [vmem:[%s1067] sm:$0xff]
        %v1069 = vsel %vm493, %v1064, -inf
        %1070 = vmax.xlane.f32.xlu0 %v1069
        %v1071 = vpop.xlane.xlu0 %1070
        %v1072 = vmax.f32 %v1068, %v1071
        %v1073 = vsub.f32 %v1068, %v1072
        %v1074 = vmul.f32 %v1073, 1.442695
        %v1075 = vpow.pop %v1074
        %1077 = vset.pattern.permute.xlu0 0
        %1078 = vperm.xlu0 %1077, %v1072
        %v1079 = vpop.permute.xlu0 %1078
        %v1081 = vsub.f32 %v1064, %v1079
        %v1082 = vmul.f32 %v1081, 1.442695
        %v1083 = vpow.pop %v1082
        %s1084 = scalar_lea.vmem [#allocation3], 24
        %v1085 = vld [vmem:[%s1084] sm:$0xff]
        %v1086 = vmul.f32 %v1075, %v1085
        %v1087 = vsel %vm493, %v1083, 0.0
        %1088 = vadd.xlane.f32.xlu0 %v1087
        %v1089 = vpop.xlane.xlu0 %1088
        %v1090 = vadd.f32 %v1086, %v1089
        %1091 = vst.msk [vmem:[%s1084] sm:$0xff] %vm515, %v1090
        %s1092 = scalar_lea.vmem [#allocation4], 24
        %v1093 = vld [vmem:[%s1092] sm:$0xff]
        %1095 = vset.pattern.permute.xlu0 0
        %1096 = vperm.xlu0 %1095, %v1075
        %v1097 = vpop.permute.xlu0 %1096
        %v1099 = vmul.f32 %v1097, %v1093
        %v1101 = vsel %vm493, %v1083, 0
        %1103 = vmatprep.subr.mxu0 0.0
        %1104 = vmatpush1.msra.mxu0 %v993
        %1105 = vmatprep.subr.mxu0 0.0
        %1106 = vmatpush1.msra.mxu0 0.0
        %1107 = vmatprep.subr.mxu0 0.0
        %1108 = vmatpush1.msra.mxu0 0.0
        %1109 = vmatprep.subr.mxu0 0.0
        %1110 = vmatpush1.msra.mxu0 0.0
        %1111 = vmatprep.subr.mxu0 0.0
        %1112 = vmatpush1.msra.mxu0 0.0
        %1113 = vmatprep.subr.mxu0 0.0
        %1114 = vmatpush1.msra.mxu0 0.0
        %1115 = vmatprep.subr.mxu0 0.0
        %1116 = vmatpush1.msra.mxu0 0.0
        %1117 = vmatprep.subr.mxu0 0.0
        %1118 = vmatpush1.msra.mxu0 0.0
        %1119 = vmatprep.subr.mxu0 0.0
        %1120 = vmatpush1.msra.mxu0 0.0
        %1121 = vmatprep.subr.mxu0 0.0
        %1122 = vmatpush1.msra.mxu0 0.0
        %1123 = vmatprep.subr.mxu0 0.0
        %1124 = vmatpush1.msra.mxu0 0.0
        %1125 = vmatprep.subr.mxu0 0.0
        %1126 = vmatpush1.msra.mxu0 0.0
        %1127 = vmatprep.subr.mxu0 0.0
        %1128 = vmatpush1.msra.mxu0 0.0
        %1129 = vmatprep.subr.mxu0 0.0
        %1130 = vmatpush1.msra.mxu0 0.0
        %1131 = vmatprep.subr.mxu0 0.0
        %1132 = vmatpush1.msra.mxu0 0.0
        %1133 = vmatprep.subr.mxu0 0.0
        %1134 = vmatpush1.msra.mxu0 0.0
        %1135 = vmatprep.subr.mxu0 0.0
        %1136 = vmatpush1.msra.mxu0 0.0
        %1137 = vmatprep.subr.mxu0 0.0
        %1138 = vmatpush1.msra.mxu0 0.0
        %1139 = vmatprep.subr.mxu0 0.0
        %1140 = vmatpush1.msra.mxu0 0.0
        %1141 = vmatprep.subr.mxu0 0.0
        %1142 = vmatpush1.msra.mxu0 0.0
        %1143 = vmatprep.subr.mxu0 0.0
        %1144 = vmatpush1.msra.mxu0 0.0
        %1145 = vmatprep.subr.mxu0 0.0
        %1146 = vmatpush1.msra.mxu0 0.0
        %1147 = vmatprep.subr.mxu0 0.0
        %1148 = vmatpush1.msra.mxu0 0.0
        %1149 = vmatprep.subr.mxu0 0.0
        %1150 = vmatpush1.msra.mxu0 0.0
        %1151 = vmatprep.subr.mxu0 0.0
        %1152 = vmatpush1.msra.mxu0 0.0
        %1153 = vmatprep.subr.mxu0 0.0
        %1154 = vmatpush1.msra.mxu0 0.0
        %1155 = vmatprep.subr.mxu0 0.0
        %1156 = vmatpush1.msra.mxu0 0.0
        %1157 = vmatprep.subr.mxu0 0.0
        %1158 = vmatpush1.msra.mxu0 0.0
        %1159 = vmatprep.subr.mxu0 0.0
        %1160 = vmatpush1.msra.mxu0 0.0
        %1161 = vmatprep.subr.mxu0 0.0
        %1162 = vmatpush1.msra.mxu0 0.0
        %1163 = vmatprep.subr.mxu0 0.0
        %1164 = vmatpush1.msra.mxu0 0.0
        %1165 = vmatprep.subr.mxu0 0.0
        %1166 = vmatpush1.msra.mxu0 0.0
        %1167 = vmatprep.mubr.f32.mxu0 0.0
        %1168 = vmatmul.mubr.f32.gmra.mrb[0].mxu0 %v1101
        %v1169 = vpop.f32.mrb[0].mxu0
        %v1170 = vadd.f32 0.0, %v1169
        %v1171 = vpop.f32.mrb[0].mxu0
        %1172 = vdwg.mxu0
        %v1173 = vadd.f32 %v1099, %v1170
        %1174 = vst.msk [vmem:[%s1092] sm:$0xff] %vm418, %v1173
        %1175 = vst.msk [vmem:[%s1067] sm:$0xff] %vm515, %v1072
        // Predicated region
        $region57: #{tpu_custom_call.1} parent=35 // pred_check
          %p1176 = pneg %p386
        $region58: #{tpu_custom_call.1} parent=35 // pred_check_branch
          %1178 = sbr.rel (%p1176) target = $region60
        $region59: #{tpu_custom_call.1} parent=35 // pred_region
          %v1179 = vld [vmem:[#allocation3] sm:$0xff]
          %v1180 = vrcp.pop %v1179
          %v1181 = vmul.f32 1.0, %v1180
          %v1182 = vld [vmem:[#allocation4] sm:$0xff]
          %1184 = vset.pattern.permute.xlu0 0
          %1185 = vperm.xlu0 %1184, %v1181
          %v1186 = vpop.permute.xlu0 %1185
          %v1188 = vmul.f32 %v1182, %v1186
          %1189 = vst.msk [vmem:[%s381] sm:$0xff] %vm418, %v1188
          %v1190 = vld [vmem:[%s700] sm:$0xff]
          %v1191 = vrcp.pop %v1190
          %v1192 = vmul.f32 1.0, %v1191
          %v1193 = vld [vmem:[%s708] sm:$0xff]
          %1195 = vset.pattern.permute.xlu0 0
          %1196 = vperm.xlu0 %1195, %v1192
          %v1197 = vpop.permute.xlu0 %1196
          %v1199 = vmul.f32 %v1193, %v1197
          %s1200 = scalar_lea.vmem %s381, 8 [#allocation13]
          %1201 = vst.msk [vmem:[%s1200] sm:$0xff] %vm418, %v1199
          %v1202 = vld [vmem:[%s892] sm:$0xff]
          %v1203 = vrcp.pop %v1202
          %v1204 = vmul.f32 1.0, %v1203
          %v1205 = vld [vmem:[%s900] sm:$0xff]
          %1207 = vset.pattern.permute.xlu0 0
          %1208 = vperm.xlu0 %1207, %v1204
          %v1209 = vpop.permute.xlu0 %1208
          %v1211 = vmul.f32 %v1205, %v1209
          %s1212 = scalar_lea.vmem %s381, 16 [#allocation13]
          %1213 = vst.msk [vmem:[%s1212] sm:$0xff] %vm418, %v1211
          %v1214 = vld [vmem:[%s1084] sm:$0xff]
          %v1215 = vrcp.pop %v1214
          %v1216 = vmul.f32 1.0, %v1215
          %v1217 = vld [vmem:[%s1092] sm:$0xff]
          %1219 = vset.pattern.permute.xlu0 0
          %1220 = vperm.xlu0 %1219, %v1216
          %v1221 = vpop.permute.xlu0 %1220
          %v1223 = vmul.f32 %v1217, %v1221
          %s1224 = scalar_lea.vmem %s381, 24 [#allocation13]
          %1225 = vst.msk [vmem:[%s1224] sm:$0xff] %vm418, %v1223
        $region60: #{tpu_custom_call.1} parent=35 // pred_fallthru
          _
        %s1226 = sand.u32 %s183, 1
        %s1227 = scalar_lea.sflag [#allocation7], %s1226
        %s1228 = sand.u32 %s183, 1
        %s1229 = smul.addr %s1228, 32
        %s1230 = scalar_lea.vmem [#allocation13], %s1229
        // Predicated region
        $region61: #{tpu_custom_call.1} parent=35 // pred_check
          %p1231 = pneg %p193
        $region62: #{tpu_custom_call.1} parent=35 // pred_check_branch
          %1233 = sbr.rel (%p1231) target = $region64
        $region63: #{tpu_custom_call.1} parent=35 // pred_region
          %s1234 = smul.u32 4, %s34
          %s1236 = ssub.s32 512, 512
          %1237 = vsyncadd %s1227, %s1236
          %s1238 = sadd.s32 %s35, %s1234
          %s1239 = smul.addr %s33, 4
          %s1240 = sadd.s32 %s1238, %s1239
          %s1241 = smul.addr %s1240, 128
          %s1242 = scalar_lea.hbm %s4, %s1241
          %s1243 = sshll.u32 %s1230, 4
          %s1244 = int_to_ptr.vmem [resolvable:$true] %s1243
          %1249 = dma.vmem_to_hbm [thread:$0]  %s1244, 512, %s1242, %s1227, 128, 128, 8
        $region64: #{tpu_custom_call.1} parent=35 // pred_fallthru
          _
      $region36: #{tpu_custom_call.1} parent=5 // pred_fallthru
        _
      %p1250 = scmp.le.s32.totalorder 2, %s22
      // Predicated region
      $region65: #{tpu_custom_call.1} parent=5 // pred_check
        %p1251 = pneg %p1250
      $region66: #{tpu_custom_call.1} parent=5 // pred_check_branch
        %1253 = sbr.rel (%p1251) target = $region68
      $region67: #{tpu_custom_call.1} parent=5 // pred_region
        %s1254 = ssub.s32 %s22, 2
        // Predicated region
        $region69: #{tpu_custom_call.1} parent=67 // pred_check
          %p1255 = pneg %p199
        $region70: #{tpu_custom_call.1} parent=67 // pred_check_branch
          %1257 = sbr.rel (%p1255) target = $region72
        $region71: #{tpu_custom_call.1} parent=67 // pred_region
          %s1258 = sand.u32 %s184, 1
          %s1259 = scalar_lea.sflag [#allocation7], %s1258
          %s1260 = sand.u32 %s184, 1
          %s1261 = smul.addr %s1260, 32
          %s1262 = scalar_lea.vmem [#allocation13], %s1261
          %1263 = dma.done %s1259, 512
        $region72: #{tpu_custom_call.1} parent=67 // pred_fallthru
          _
      $region68: #{tpu_custom_call.1} parent=5 // pred_fallthru
        _
    $region6: #{tpu_custom_call.1} parent=1 // loop_footer
      %s26 = sadd.s32 1, %s22
    $region7: #{tpu_custom_call.1} parent=1 // loop_footer_branch
      %21 = sbr.rel target = $region3
    $region8: #{tpu_custom_call.1} parent=1 // loop_exit
      _
    %1264 = vsyncpa [#allocation6], 1
    %s1265 = scalar_lea.sflag [#allocation6], 1
    %1266 = vsyncpa %s1265, 1
    %1267 = vsyncpa [#allocation9], 1
    %s1268 = scalar_lea.sflag [#allocation9], 1
    %1269 = vsyncpa %s1268, 1
    %1270 = vsyncpa [#allocation12], 1
    %s1271 = scalar_lea.sflag [#allocation12], 1
    %1272 = vsyncpa %s1271, 1
    %1273 = vsyncpa [#allocation7], 1
    %s1274 = scalar_lea.sflag [#allocation7], 1
    %1275 = vsyncpa %s1274, 1

</llo_original>
